<compile_context>
chip_gen: v7x
topology: tpu7x:2x2x1
jax: 0.10.0
libtpu: 0.0.40
codegen_flags: <defaults>
</compile_context>

<pallas_src>
import functools

import jax
import jax.numpy as jnp
from jax.experimental import pallas as pl
from jax.experimental.pallas import tpu as pltpu


def _rpn_chain_kernel(x_ref, w1_ref, b1_ref, w2_ref, b2_ref, mask_ref,
                      out_ref, xpad_ref, *, Wp, N):
    """Grid = (batch b, repetition r).

    x_ref    : (1, C, N)   zero-padded, spatially-flattened input (N=(H+2)*(W+2))
    w1_ref   : (9, C, C)   3x3 conv weights, tap-major, each (Cout, Cin)
    b1_ref   : (C, 1)
    w2_ref   : (6A, C)     fused cls|regre 1x1 weights (channels-out major)
    b2_ref   : (6A, 1)
    mask_ref : (1, N)      1.0 at interior spatial positions, 0.0 on the border
    out_ref  : (1, 1, 6A, N)  fused cls|regre output for this (r, b)
    xpad_ref : VMEM (C, N) scratch; holds the current activation (zero border),
               persists across repetitions for a given batch element.
    """
    r = pl.program_id(1)

    # First repetition for this batch element: load the padded input.
    @pl.when(r == 0)
    def _():
        xpad_ref[...] = x_ref[0]

    xp = xpad_ref[...]        # (C, N), zero border
    mask = mask_ref[...]      # (1, N)
    c_out = w1_ref.shape[1]

    # 3x3 "same" conv: 9 accumulated matmuls; the (dy, dx) shift is realized as
    # a lane-axis roll of the flattened padded activation (XLU), not a
    # slice+reshape copy.  Wrap-around only touches border outputs, which are
    # masked to zero below.
    acc = jnp.zeros((c_out, N), jnp.float32)
    k = 0
    for dy in range(3):
        for dx in range(3):
            off = (dy - 1) * Wp + (dx - 1)
            tap = xp if off == 0 else pltpu.roll(xp, shift=(-off) % N, axis=1)
            acc = acc + jnp.dot(w1_ref[k], tap,
                                preferred_element_type=jnp.float32)
            k += 1

    # Bias + ReLU; re-zero the padded border so the next repetition sees a
    # correctly zero-padded activation.
    y = jnp.maximum(acc + b1_ref[...], 0.0) * mask     # (C, N)
    xpad_ref[...] = y                                  # persist for next r

    # Fused cls|regre 1x1 convs: one matmul, lane-dense (last dim = N) store.
    out = jnp.dot(w2_ref[...], y,
                  preferred_element_type=jnp.float32) + b2_ref[...]  # (6A, N)
    out_ref[0, 0] = out


def rpn_head_forward(x_nchw, params):
    """Exact RPNhead.forward semantics (NCHW in, lists of NCHW out)."""
    w1, b1, wc, bc, wr, br = params
    B, C, H, W = x_nchw.shape
    Hp, Wp = H + 2, W + 2
    N = Hp * Wp
    A2, A4 = wc.shape[1], wr.shape[1]
    CO = A2 + A4
    R = B  # `for ft in x` iterates over the ORIGINAL batch dim -> B repetitions

    # One-time zero pad + flatten spatial (input is already channels-first).
    xpad = jnp.pad(x_nchw, ((0, 0), (0, 0), (1, 1), (1, 1))).reshape(B, C, N)
    xpad = xpad.astype(jnp.float32)

    # Weight re-layouts (tiny, done once per call).
    w1_t = jnp.transpose(w1, (0, 1, 3, 2)).reshape(9, C, C)   # [tap, Cout, Cin]
    b1_t = b1.reshape(C, 1)
    w2_t = jnp.concatenate([wc, wr], axis=1).T                # (6A, C)
    b2_t = jnp.concatenate([bc, br], axis=1).reshape(CO, 1)   # (6A, 1)

    # Interior mask over the flattened padded spatial grid.
    pos = jnp.arange(N)
    hh, ww = pos // Wp, pos % Wp
    mask = (((hh >= 1) & (hh <= H) & (ww >= 1) & (ww <= W))
            .astype(jnp.float32).reshape(1, N))

    out = pl.pallas_call(
        functools.partial(_rpn_chain_kernel, Wp=Wp, N=N),
        out_shape=jax.ShapeDtypeStruct((R, B, CO, N), jnp.float32),
        grid=(B, R),
        in_specs=[
            pl.BlockSpec((1, C, N), lambda b, r: (b, 0, 0)),
            pl.BlockSpec((9, C, C), lambda b, r: (0, 0, 0)),
            pl.BlockSpec((C, 1), lambda b, r: (0, 0)),
            pl.BlockSpec((CO, C), lambda b, r: (0, 0)),
            pl.BlockSpec((CO, 1), lambda b, r: (0, 0)),
            pl.BlockSpec((1, N), lambda b, r: (0, 0)),
        ],
        out_specs=pl.BlockSpec((1, 1, CO, N), lambda b, r: (r, b, 0, 0)),
        scratch_shapes=[pltpu.VMEM((C, N), jnp.float32)],
        compiler_params=pltpu.CompilerParams(
            # batch is independent (megacore-shardable); the repetition chain
            # is a serial dependency through the VMEM scratch -> arbitrary.
            dimension_semantics=("parallel", "arbitrary")),
    )(xpad, w1_t, b1_t, w2_t, b2_t, mask)

    # Crop the padded border, split fused channels -> already NCHW.
    out5 = out.reshape(R, B, CO, Hp, Wp)[:, :, :, 1:H + 1, 1:W + 1]
    cls5, reg5 = out5[:, :, :A2], out5[:, :, A2:]
    cls_list = [cls5[r] for r in range(R)]
    reg_list = [reg5[r] for r in range(R)]
    return cls_list, reg_list


def ref_forward(x_nchw, params):
    """Pure-JAX reference (lax.conv, HIGHEST precision) for correctness."""
    w1, b1, wc, bc, wr, br = params
    w1_oihw = jnp.transpose(w1, (3, 2, 0, 1))
    wc_oihw = wc.T[:, :, None, None]
    wr_oihw = wr.T[:, :, None, None]
    dn = ('NCHW', 'OIHW', 'NCHW')
    hi = jax.lax.Precision.HIGHEST

    def conv(x, w, b):
        y = jax.lax.conv_general_dilated(x, w, (1, 1), 'SAME',
                                         dimension_numbers=dn, precision=hi)
        return y + b[0][None, :, None, None]

    cur = x_nchw
    cls_list, reg_list = [], []
    for _ in range(x_nchw.shape[0]):
        cur = jax.nn.relu(conv(cur, w1_oihw, b1))
        cls_list.append(conv(cur, wc_oihw, bc))
        reg_list.append(conv(cur, wr_oihw, br))
    return cls_list, reg_list


def make_params(key, channels, num_anchors):
    k1, k2, k3, k4, k5, k6 = jax.random.split(key, 6)
    s = 0.1
    w1 = s * jax.random.normal(k1, (3, 3, channels, channels), jnp.float32)
    b1 = s * jax.random.normal(k2, (1, channels), jnp.float32)
    wc = s * jax.random.normal(k3, (channels, num_anchors * 2), jnp.float32)
    bc = s * jax.random.normal(k4, (1, num_anchors * 2), jnp.float32)
    wr = s * jax.random.normal(k5, (channels, num_anchors * 4), jnp.float32)
    br = s * jax.random.normal(k6, (1, num_anchors * 4), jnp.float32)
    return (w1, b1, wc, bc, wr, br)


if __name__ == "__main__":
    B, C, H, W = 2, 4, 16, 16
    A = 3  # num_anchors

    key = jax.random.PRNGKey(0)
    kx, kp = jax.random.split(key)
    x = jax.random.normal(kx, (B, C, H, W), jnp.float32)
    params = make_params(kp, C, A)

    fwd = jax.jit(rpn_head_forward)
    cls_list, reg_list = fwd(x, params)
    jax.block_until_ready((cls_list, reg_list))

    # Sanity-check against a pure-JAX (f32 HIGHEST) reference.  Kernel matmuls
    # run at default MXU precision (bf16 passes), hence the 1e-2 tolerance.
    cls_ref, reg_ref = ref_forward(x, params)
    for a, b in zip(cls_list, cls_ref):
        assert a.shape == (B, 2 * A, H, W)
        assert jnp.allclose(a, b, atol=1e-2, rtol=1e-2), \
            float(jnp.max(jnp.abs(a - b)))
    for a, b in zip(reg_list, reg_ref):
        assert a.shape == (B, 4 * A, H, W)
        assert jnp.allclose(a, b, atol=1e-2, rtol=1e-2), \
            float(jnp.max(jnp.abs(a - b)))

    print("KERNEL_OK")
</pallas_src>

<mosaic_0001>
module attributes {stable_mosaic.version = 11 : i64} {
  func.func @_rpn_chain_kernel(%arg0: i32, %arg1: i32, %arg2: memref<1x4x324xf32, #tpu.memory_space<vmem>>, %arg3: memref<9x4x4xf32, #tpu.memory_space<vmem>>, %arg4: memref<4x1xf32, #tpu.memory_space<vmem>>, %arg5: memref<18x4xf32, #tpu.memory_space<vmem>>, %arg6: memref<18x1xf32, #tpu.memory_space<vmem>>, %arg7: memref<1x324xf32, #tpu.memory_space<vmem>>, %arg8: memref<1x1x18x324xf32, #tpu.memory_space<vmem>>, %arg9: memref<4x324xf32, #tpu.memory_space<vmem>>) attributes {dimension_semantics = [#tpu.dimension_semantics<parallel>, #tpu.dimension_semantics<arbitrary>], iteration_bounds = array<i64: 2, 2>, scalar_prefetch = 0 : i64, scratch_operands = 1 : i64, tpu.core_type = #tpu.core_type<tc>, window_params = [{transform_indices = @transform_0, window_bounds = array<i64: 1, 4, 324>}, {pipeline_mode = #tpu.pipeline_mode<synchronous>, transform_indices = @transform_1, window_bounds = array<i64: 9, 4, 4>}, {pipeline_mode = #tpu.pipeline_mode<synchronous>, transform_indices = @transform_2, window_bounds = array<i64: 4, 1>}, {pipeline_mode = #tpu.pipeline_mode<synchronous>, transform_indices = @transform_3, window_bounds = array<i64: 18, 4>}, {pipeline_mode = #tpu.pipeline_mode<synchronous>, transform_indices = @transform_4, window_bounds = array<i64: 18, 1>}, {pipeline_mode = #tpu.pipeline_mode<synchronous>, transform_indices = @transform_5, window_bounds = array<i64: 1, 324>}, {transform_indices = @transform_6, window_bounds = array<i64: 1, 1, 18, 324>}]} {
    %c0_i32 = arith.constant 0 : i32
    %0 = arith.cmpi eq, %arg1, %c0_i32 : i32
    %1 = arith.extui %0 : i1 to i32
    %c0_i32_0 = arith.constant 0 : i32
    %2 = arith.cmpi ne, %1, %c0_i32_0 : i32
    scf.if %2 {
      %c0_46 = arith.constant 0 : index
      %c0_47 = arith.constant 0 : index
      %c0_48 = arith.constant 0 : index
      %66 = vector.load %arg2[%c0_46, %c0_47, %c0_48] : memref<1x4x324xf32, #tpu.memory_space<vmem>>, vector<1x4x324xf32>
      %67 = vector.shape_cast %66 : vector<1x4x324xf32> to vector<4x324xf32>
      %c0_49 = arith.constant 0 : index
      %c0_50 = arith.constant 0 : index
      %68 = vector.load %arg9[%c0_49, %c0_50] : memref<4x324xf32, #tpu.memory_space<vmem>>, vector<4x324xf32>
      tpu.vector_store %arg9[%c0_49, %c0_50], %67 {strides = array<i32>} : memref<4x324xf32, #tpu.memory_space<vmem>>, vector<4x324xf32>,
    } else {
    }
    %c0 = arith.constant 0 : index
    %c0_1 = arith.constant 0 : index
    %3 = vector.load %arg9[%c0, %c0_1] : memref<4x324xf32, #tpu.memory_space<vmem>>, vector<4x324xf32>
    %c0_2 = arith.constant 0 : index
    %c0_3 = arith.constant 0 : index
    %4 = vector.load %arg7[%c0_2, %c0_3] : memref<1x324xf32, #tpu.memory_space<vmem>>, vector<1x324xf32>
    %cst = arith.constant 0.000000e+00 : f32
    %5 = vector.broadcast %cst : f32 to vector<4x324xf32>
    %c19_i32 = arith.constant 19 : i32
    %6 = tpu.dynamic_rotate %3 by %c19_i32 dim 1 : vector<4x324xf32>, i32 -> vector<4x324xf32>
    %c0_4 = arith.constant 0 : index
    %c0_5 = arith.constant 0 : index
    %c0_6 = arith.constant 0 : index
    %7 = vector.load %arg3[%c0_4, %c0_5, %c0_6] : memref<9x4x4xf32, #tpu.memory_space<vmem>>, vector<1x4x4xf32>
    %8 = vector.shape_cast %7 : vector<1x4x4xf32> to vector<4x4xf32>
    %cst_7 = arith.constant dense<0.000000e+00> : vector<4x324xf32>
    %9 = tpu.matmul %8, %6, %cst_7 {dimension_numbers = #tpu.dot_dimension_numbers<[1], [0], [0], [1], [0, 0, 1, 1], [], []>} : vector<4x4xf32>, vector<4x324xf32>, vector<4x324xf32> -> vector<4x324xf32>
    %10 = arith.addf %5, %9 : vector<4x324xf32>
    %c18_i32 = arith.constant 18 : i32
    %11 = tpu.dynamic_rotate %3 by %c18_i32 dim 1 : vector<4x324xf32>, i32 -> vector<4x324xf32>
    %c1 = arith.constant 1 : index
    %c0_8 = arith.constant 0 : index
    %c0_9 = arith.constant 0 : index
    %12 = vector.load %arg3[%c1, %c0_8, %c0_9] : memref<9x4x4xf32, #tpu.memory_space<vmem>>, vector<1x4x4xf32>
    %13 = vector.shape_cast %12 : vector<1x4x4xf32> to vector<4x4xf32>
    %cst_10 = arith.constant dense<0.000000e+00> : vector<4x324xf32>
    %14 = tpu.matmul %13, %11, %cst_10 {dimension_numbers = #tpu.dot_dimension_numbers<[1], [0], [0], [1], [0, 0, 1, 1], [], []>} : vector<4x4xf32>, vector<4x324xf32>, vector<4x324xf32> -> vector<4x324xf32>
    %15 = arith.addf %10, %14 : vector<4x324xf32>
    %c17_i32 = arith.constant 17 : i32
    %16 = tpu.dynamic_rotate %3 by %c17_i32 dim 1 : vector<4x324xf32>, i32 -> vector<4x324xf32>
    %c2 = arith.constant 2 : index
    %c0_11 = arith.constant 0 : index
    %c0_12 = arith.constant 0 : index
    %17 = vector.load %arg3[%c2, %c0_11, %c0_12] : memref<9x4x4xf32, #tpu.memory_space<vmem>>, vector<1x4x4xf32>
    %18 = vector.shape_cast %17 : vector<1x4x4xf32> to vector<4x4xf32>
    %cst_13 = arith.constant dense<0.000000e+00> : vector<4x324xf32>
    %19 = tpu.matmul %18, %16, %cst_13 {dimension_numbers = #tpu.dot_dimension_numbers<[1], [0], [0], [1], [0, 0, 1, 1], [], []>} : vector<4x4xf32>, vector<4x324xf32>, vector<4x324xf32> -> vector<4x324xf32>
    %20 = arith.addf %15, %19 : vector<4x324xf32>
    %c1_i32 = arith.constant 1 : i32
    %21 = tpu.dynamic_rotate %3 by %c1_i32 dim 1 : vector<4x324xf32>, i32 -> vector<4x324xf32>
    %c3 = arith.constant 3 : index
    %c0_14 = arith.constant 0 : index
    %c0_15 = arith.constant 0 : index
    %22 = vector.load %arg3[%c3, %c0_14, %c0_15] : memref<9x4x4xf32, #tpu.memory_space<vmem>>, vector<1x4x4xf32>
    %23 = vector.shape_cast %22 : vector<1x4x4xf32> to vector<4x4xf32>
    %cst_16 = arith.constant dense<0.000000e+00> : vector<4x324xf32>
    %24 = tpu.matmul %23, %21, %cst_16 {dimension_numbers = #tpu.dot_dimension_numbers<[1], [0], [0], [1], [0, 0, 1, 1], [], []>} : vector<4x4xf32>, vector<4x324xf32>, vector<4x324xf32> -> vector<4x324xf32>
    %25 = arith.addf %20, %24 : vector<4x324xf32>
    %c4 = arith.constant 4 : index
    %c0_17 = arith.constant 0 : index
    %c0_18 = arith.constant 0 : index
    %26 = vector.load %arg3[%c4, %c0_17, %c0_18] : memref<9x4x4xf32, #tpu.memory_space<vmem>>, vector<1x4x4xf32>
    %27 = vector.shape_cast %26 : vector<1x4x4xf32> to vector<4x4xf32>
    %cst_19 = arith.constant dense<0.000000e+00> : vector<4x324xf32>
    %28 = tpu.matmul %27, %3, %cst_19 {dimension_numbers = #tpu.dot_dimension_numbers<[1], [0], [0], [1], [0, 0, 1, 1], [], []>} : vector<4x4xf32>, vector<4x324xf32>, vector<4x324xf32> -> vector<4x324xf32>
    %29 = arith.addf %25, %28 : vector<4x324xf32>
    %c323_i32 = arith.constant 323 : i32
    %30 = tpu.dynamic_rotate %3 by %c323_i32 dim 1 : vector<4x324xf32>, i32 -> vector<4x324xf32>
    %c5 = arith.constant 5 : index
    %c0_20 = arith.constant 0 : index
    %c0_21 = arith.constant 0 : index
    %31 = vector.load %arg3[%c5, %c0_20, %c0_21] : memref<9x4x4xf32, #tpu.memory_space<vmem>>, vector<1x4x4xf32>
    %32 = vector.shape_cast %31 : vector<1x4x4xf32> to vector<4x4xf32>
    %cst_22 = arith.constant dense<0.000000e+00> : vector<4x324xf32>
    %33 = tpu.matmul %32, %30, %cst_22 {dimension_numbers = #tpu.dot_dimension_numbers<[1], [0], [0], [1], [0, 0, 1, 1], [], []>} : vector<4x4xf32>, vector<4x324xf32>, vector<4x324xf32> -> vector<4x324xf32>
    %34 = arith.addf %29, %33 : vector<4x324xf32>
    %c307_i32 = arith.constant 307 : i32
    %35 = tpu.dynamic_rotate %3 by %c307_i32 dim 1 : vector<4x324xf32>, i32 -> vector<4x324xf32>
    %c6 = arith.constant 6 : index
    %c0_23 = arith.constant 0 : index
    %c0_24 = arith.constant 0 : index
    %36 = vector.load %arg3[%c6, %c0_23, %c0_24] : memref<9x4x4xf32, #tpu.memory_space<vmem>>, vector<1x4x4xf32>
    %37 = vector.shape_cast %36 : vector<1x4x4xf32> to vector<4x4xf32>
    %cst_25 = arith.constant dense<0.000000e+00> : vector<4x324xf32>
    %38 = tpu.matmul %37, %35, %cst_25 {dimension_numbers = #tpu.dot_dimension_numbers<[1], [0], [0], [1], [0, 0, 1, 1], [], []>} : vector<4x4xf32>, vector<4x324xf32>, vector<4x324xf32> -> vector<4x324xf32>
    %39 = arith.addf %34, %38 : vector<4x324xf32>
    %c306_i32 = arith.constant 306 : i32
    %40 = tpu.dynamic_rotate %3 by %c306_i32 dim 1 : vector<4x324xf32>, i32 -> vector<4x324xf32>
    %c7 = arith.constant 7 : index
    %c0_26 = arith.constant 0 : index
    %c0_27 = arith.constant 0 : index
    %41 = vector.load %arg3[%c7, %c0_26, %c0_27] : memref<9x4x4xf32, #tpu.memory_space<vmem>>, vector<1x4x4xf32>
    %42 = vector.shape_cast %41 : vector<1x4x4xf32> to vector<4x4xf32>
    %cst_28 = arith.constant dense<0.000000e+00> : vector<4x324xf32>
    %43 = tpu.matmul %42, %40, %cst_28 {dimension_numbers = #tpu.dot_dimension_numbers<[1], [0], [0], [1], [0, 0, 1, 1], [], []>} : vector<4x4xf32>, vector<4x324xf32>, vector<4x324xf32> -> vector<4x324xf32>
    %44 = arith.addf %39, %43 : vector<4x324xf32>
    %c305_i32 = arith.constant 305 : i32
    %45 = tpu.dynamic_rotate %3 by %c305_i32 dim 1 : vector<4x324xf32>, i32 -> vector<4x324xf32>
    %c8 = arith.constant 8 : index
    %c0_29 = arith.constant 0 : index
    %c0_30 = arith.constant 0 : index
    %46 = vector.load %arg3[%c8, %c0_29, %c0_30] : memref<9x4x4xf32, #tpu.memory_space<vmem>>, vector<1x4x4xf32>
    %47 = vector.shape_cast %46 : vector<1x4x4xf32> to vector<4x4xf32>
    %cst_31 = arith.constant dense<0.000000e+00> : vector<4x324xf32>
    %48 = tpu.matmul %47, %45, %cst_31 {dimension_numbers = #tpu.dot_dimension_numbers<[1], [0], [0], [1], [0, 0, 1, 1], [], []>} : vector<4x4xf32>, vector<4x324xf32>, vector<4x324xf32> -> vector<4x324xf32>
    %49 = arith.addf %44, %48 : vector<4x324xf32>
    %c0_32 = arith.constant 0 : index
    %c0_33 = arith.constant 0 : index
    %50 = vector.load %arg4[%c0_32, %c0_33] : memref<4x1xf32, #tpu.memory_space<vmem>>, vector<4x1xf32>
    %51 = vector.broadcast %50 : vector<4x1xf32> to vector<4x324xf32>
    %52 = arith.addf %49, %51 : vector<4x324xf32>
    %cst_34 = arith.constant 0.000000e+00 : f32
    %53 = vector.broadcast %cst_34 : f32 to vector<4x324xf32>
    %54 = arith.maximumf %52, %53 : vector<4x324xf32>
    %55 = vector.broadcast %4 : vector<1x324xf32> to vector<4x324xf32>
    %56 = arith.mulf %54, %55 : vector<4x324xf32>
    %c0_35 = arith.constant 0 : index
    %c0_36 = arith.constant 0 : index
    %57 = vector.load %arg9[%c0_35, %c0_36] : memref<4x324xf32, #tpu.memory_space<vmem>>, vector<4x324xf32>
    tpu.vector_store %arg9[%c0_35, %c0_36], %56 {strides = array<i32>} : memref<4x324xf32, #tpu.memory_space<vmem>>, vector<4x324xf32>,
    %c0_37 = arith.constant 0 : index
    %c0_38 = arith.constant 0 : index
    %58 = vector.load %arg5[%c0_37, %c0_38] : memref<18x4xf32, #tpu.memory_space<vmem>>, vector<18x4xf32>
    %cst_39 = arith.constant dense<0.000000e+00> : vector<18x324xf32>
    %59 = tpu.matmul %58, %56, %cst_39 {dimension_numbers = #tpu.dot_dimension_numbers<[1], [0], [0], [1], [0, 0, 1, 1], [], []>} : vector<18x4xf32>, vector<4x324xf32>, vector<18x324xf32> -> vector<18x324xf32>
    %c0_40 = arith.constant 0 : index
    %c0_41 = arith.constant 0 : index
    %60 = vector.load %arg6[%c0_40, %c0_41] : memref<18x1xf32, #tpu.memory_space<vmem>>, vector<18x1xf32>
    %61 = vector.broadcast %60 : vector<18x1xf32> to vector<18x324xf32>
    %62 = arith.addf %59, %61 : vector<18x324xf32>
    %c0_42 = arith.constant 0 : index
    %c0_43 = arith.constant 0 : index
    %c0_44 = arith.constant 0 : index
    %c0_45 = arith.constant 0 : index
    %63 = vector.load %arg8[%c0_42, %c0_43, %c0_44, %c0_45] : memref<1x1x18x324xf32, #tpu.memory_space<vmem>>, vector<1x1x18x324xf32>
    %64 = vector.shape_cast %63 : vector<1x1x18x324xf32> to vector<18x324xf32>
    %65 = vector.shape_cast %62 : vector<18x324xf32> to vector<1x1x18x324xf32>
    tpu.vector_store %arg8[%c0_42, %c0_43, %c0_44, %c0_45], %65 {strides = array<i32>} : memref<1x1x18x324xf32, #tpu.memory_space<vmem>>, vector<1x1x18x324xf32>,
    return
  }
  func.func @transform_0(%arg0: i32, %arg1: i32) -> (i32, i32, i32) {
    %c0_i32 = arith.constant 0 : i32
    %c0_i32_0 = arith.constant 0 : i32
    %c0_i32_1 = arith.constant 0 : i32
    return %arg0, %c0_i32, %c0_i32_0 : i32, i32, i32
  }
  func.func @transform_1(%arg0: i32, %arg1: i32) -> (i32, i32, i32) {
    %c0_i32 = arith.constant 0 : i32
    %c0_i32_0 = arith.constant 0 : i32
    %c0_i32_1 = arith.constant 0 : i32
    %c0_i32_2 = arith.constant 0 : i32
    return %c0_i32, %c0_i32_0, %c0_i32_1 : i32, i32, i32
  }
  func.func @transform_2(%arg0: i32, %arg1: i32) -> (i32, i32) {
    %c0_i32 = arith.constant 0 : i32
    %c0_i32_0 = arith.constant 0 : i32
    %c0_i32_1 = arith.constant 0 : i32
    return %c0_i32, %c0_i32_0 : i32, i32
  }
  func.func @transform_3(%arg0: i32, %arg1: i32) -> (i32, i32) {
    %c0_i32 = arith.constant 0 : i32
    %c0_i32_0 = arith.constant 0 : i32
    %c0_i32_1 = arith.constant 0 : i32
    return %c0_i32, %c0_i32_0 : i32, i32
  }
  func.func @transform_4(%arg0: i32, %arg1: i32) -> (i32, i32) {
    %c0_i32 = arith.constant 0 : i32
    %c0_i32_0 = arith.constant 0 : i32
    %c0_i32_1 = arith.constant 0 : i32
    return %c0_i32, %c0_i32_0 : i32, i32
  }
  func.func @transform_5(%arg0: i32, %arg1: i32) -> (i32, i32) {
    %c0_i32 = arith.constant 0 : i32
    %c0_i32_0 = arith.constant 0 : i32
    %c0_i32_1 = arith.constant 0 : i32
    return %c0_i32, %c0_i32_0 : i32, i32
  }
  func.func @transform_6(%arg0: i32, %arg1: i32) -> (i32, i32, i32, i32) {
    %c0_i32 = arith.constant 0 : i32
    %c0_i32_0 = arith.constant 0 : i32
    %c0_i32_1 = arith.constant 0 : i32
    return %arg1, %arg0, %c0_i32, %c0_i32_0 : i32, i32, i32, i32
  }
}

</mosaic_0001>

<llo_original>
// kernel: rpn_head_forward.1
$region0: #{rpn_head_forward.1}
  #allocation0 [shape = 'u32[]', space=smem, size = 0x4, offset = 0x4, fixed_abs, tag = 'smem constant byte address 0x4 - core index']
  #allocation1 [shape = 'u32[144,128]{1,0:T(1,128)}', space=vmem, size = 0x12000, scoped, tag = 'internal scratch']
  #allocation2 [shape = 'f32[4,324]{1,0:T(4,128)}', space=vmem, size = 0x1800, scoped, tag = 'scratch operand']
  %s0 = inlined_call_operand.vmem [shape: f32[2,4,324], index: 0, kind: input, shape index: {}]
  %s1 = inlined_call_operand.vmem [shape: f32[9,4,4], index: 1, kind: input, shape index: {}]
  %s2 = inlined_call_operand.vmem [shape: f32[4,1], index: 2, kind: input, shape index: {}]
  %s3 = inlined_call_operand.vmem [shape: f32[18,4], index: 3, kind: input, shape index: {}]
  %s4 = inlined_call_operand.vmem [shape: f32[18,1], index: 4, kind: input, shape index: {}]
  %s5 = inlined_call_operand.vmem [shape: f32[1,324], index: 5, kind: input, shape index: {}]
  %s6 = inlined_call_operand.vmem [shape: f32[2,2,18,324], index: 6, kind: output, shape index: {}]
  %s7 = sld [smem:[#allocation0]]
  $region61: #{rpn_head_forward.1} parent=0
    _
  %s9 = ssub.s32 1, %s7
  %s10 = scalar_select 0, %s9, %s7
  loop: start=0, step=1, limit=6
  $region2: #{rpn_head_forward.1} parent=0 // loop_pre_header
    _
  $region3: #{rpn_head_forward.1} parent=0 // loop_header
    %s12 = sphi 0, %s16
    %p13 = scmp.ge.s32.totalorder %s12, 6
    %s19 = sphi 0, %s31
    %s20 = sphi 0, %s27
    %s21 = sphi 0, %s19
    %s22 = sphi 0, %s20
    %s23 = sphi 0, %s21
    %s24 = sphi 0, %s22
    %s34 = sphi 0, %s36
    %s37 = sphi 0, %s34
    %s38 = sphi 0, %s37
    %s54 = sphi 0, %s38
    %s58 = sphi 0, %s58
    %s60 = sphi 0, %s58
    %s61 = sphi 0, %s60
    %s75 = sphi 0, %s61
    %s79 = sphi 0, %s79
    %s81 = sphi 0, %s79
    %s82 = sphi 0, %s81
    %s96 = sphi 0, %s82
    %s100 = sphi 0, %s100
    %s102 = sphi 0, %s100
    %s103 = sphi 0, %s102
    %s117 = sphi 0, %s103
    %s121 = sphi 0, %s121
    %s123 = sphi 0, %s121
    %s124 = sphi 0, %s123
    %s138 = sphi 0, %s124
    %s142 = sphi 0, %s142
    %s144 = sphi 0, %s142
    %s145 = sphi 0, %s144
    %s159 = sphi 0, %s145
    %s167 = sphi 0, %s169
    %s170 = sphi 0, %s167
    %s171 = sphi 0, %s170
    %s187 = sphi 0, %s171
  $region4: #{rpn_head_forward.1} parent=0 // loop_header_branch
    %15 = sbr.rel (%p13) target = $region8
  $region5: #{rpn_head_forward.1} parent=0 // loop_body
    %s17 = ssub.s32 %s12, 1
    %s18 = ssub.s32 %s12, 2
    %s25 = sadd.s32 1, %s20
    %p26 = scmp.ge.s32.totalorder %s25, 2
    %s27 = scalar_select %p26, 0, %s25
    %s28 = sadd.s32 1, %s19
    %s29 = scalar_select %p26, %s28, %s19
    %p30 = scmp.ge.s32.totalorder %s29, 2
    %s31 = scalar_select %p30, 0, %s29
    %s32 = ssub.s32 %s19, %s31
    %p33 = scmp.eq.s32.totalorder %s32, 0
    %s35 = sadd.s32 %s34, 1
    %s36 = scalar_select %p33, %s34, %s35
    %p39 = pneg %p33
    %p40 = scmp.eq.s32.totalorder %s12, 3
    %p41 = por %p39, %p40
    %p42 = scmp.ne.s32.totalorder %s34, %s37
    %p43 = scmp.eq.s32.totalorder %s12, 0
    %p44 = por %p42, %p43
    %p45 = scmp.ne.s32.totalorder %s34, %s37
    %p46 = scmp.eq.s32.totalorder %s17, 3
    %p47 = por %p45, %p46
    %p48 = scmp.ne.s32.totalorder %s37, %s38
    %p49 = scmp.eq.s32.totalorder %s17, 0
    %p50 = por %p48, %p49
    %p51 = scmp.ne.s32.totalorder %s37, %s38
    %p52 = scmp.eq.s32.totalorder %s18, 3
    %p53 = por %p51, %p52
    %p55 = scmp.ne.s32.totalorder %s38, %s54
    %p56 = scmp.eq.s32.totalorder %s18, 0
    %p57 = por %p55, %p56
    %s59 = sadd.s32 %s58, 1
    %p62 = scmp.eq.s32.totalorder %s12, 3
    %p63 = scmp.ne.s32.totalorder %s58, %s60
    %p64 = scmp.eq.s32.totalorder %s12, 0
    %p65 = por %p63, %p64
    %p66 = scmp.ne.s32.totalorder %s58, %s60
    %p67 = scmp.eq.s32.totalorder %s17, 3
    %p68 = por %p66, %p67
    %p69 = scmp.ne.s32.totalorder %s60, %s61
    %p70 = scmp.eq.s32.totalorder %s17, 0
    %p71 = por %p69, %p70
    %p72 = scmp.ne.s32.totalorder %s60, %s61
    %p73 = scmp.eq.s32.totalorder %s18, 3
    %p74 = por %p72, %p73
    %p76 = scmp.ne.s32.totalorder %s61, %s75
    %p77 = scmp.eq.s32.totalorder %s18, 0
    %p78 = por %p76, %p77
    %s80 = sadd.s32 %s79, 1
    %p83 = scmp.eq.s32.totalorder %s12, 3
    %p84 = scmp.ne.s32.totalorder %s79, %s81
    %p85 = scmp.eq.s32.totalorder %s12, 0
    %p86 = por %p84, %p85
    %p87 = scmp.ne.s32.totalorder %s79, %s81
    %p88 = scmp.eq.s32.totalorder %s17, 3
    %p89 = por %p87, %p88
    %p90 = scmp.ne.s32.totalorder %s81, %s82
    %p91 = scmp.eq.s32.totalorder %s17, 0
    %p92 = por %p90, %p91
    %p93 = scmp.ne.s32.totalorder %s81, %s82
    %p94 = scmp.eq.s32.totalorder %s18, 3
    %p95 = por %p93, %p94
    %p97 = scmp.ne.s32.totalorder %s82, %s96
    %p98 = scmp.eq.s32.totalorder %s18, 0
    %p99 = por %p97, %p98
    %s101 = sadd.s32 %s100, 1
    %p104 = scmp.eq.s32.totalorder %s12, 3
    %p105 = scmp.ne.s32.totalorder %s100, %s102
    %p106 = scmp.eq.s32.totalorder %s12, 0
    %p107 = por %p105, %p106
    %p108 = scmp.ne.s32.totalorder %s100, %s102
    %p109 = scmp.eq.s32.totalorder %s17, 3
    %p110 = por %p108, %p109
    %p111 = scmp.ne.s32.totalorder %s102, %s103
    %p112 = scmp.eq.s32.totalorder %s17, 0
    %p113 = por %p111, %p112
    %p114 = scmp.ne.s32.totalorder %s102, %s103
    %p115 = scmp.eq.s32.totalorder %s18, 3
    %p116 = por %p114, %p115
    %p118 = scmp.ne.s32.totalorder %s103, %s117
    %p119 = scmp.eq.s32.totalorder %s18, 0
    %p120 = por %p118, %p119
    %s122 = sadd.s32 %s121, 1
    %p125 = scmp.eq.s32.totalorder %s12, 3
    %p126 = scmp.ne.s32.totalorder %s121, %s123
    %p127 = scmp.eq.s32.totalorder %s12, 0
    %p128 = por %p126, %p127
    %p129 = scmp.ne.s32.totalorder %s121, %s123
    %p130 = scmp.eq.s32.totalorder %s17, 3
    %p131 = por %p129, %p130
    %p132 = scmp.ne.s32.totalorder %s123, %s124
    %p133 = scmp.eq.s32.totalorder %s17, 0
    %p134 = por %p132, %p133
    %p135 = scmp.ne.s32.totalorder %s123, %s124
    %p136 = scmp.eq.s32.totalorder %s18, 3
    %p137 = por %p135, %p136
    %p139 = scmp.ne.s32.totalorder %s124, %s138
    %p140 = scmp.eq.s32.totalorder %s18, 0
    %p141 = por %p139, %p140
    %s143 = sadd.s32 %s142, 1
    %p146 = scmp.eq.s32.totalorder %s12, 3
    %p147 = scmp.ne.s32.totalorder %s142, %s144
    %p148 = scmp.eq.s32.totalorder %s12, 0
    %p149 = por %p147, %p148
    %p150 = scmp.ne.s32.totalorder %s142, %s144
    %p151 = scmp.eq.s32.totalorder %s17, 3
    %p152 = por %p150, %p151
    %p153 = scmp.ne.s32.totalorder %s144, %s145
    %p154 = scmp.eq.s32.totalorder %s17, 0
    %p155 = por %p153, %p154
    %p156 = scmp.ne.s32.totalorder %s144, %s145
    %p157 = scmp.eq.s32.totalorder %s18, 3
    %p158 = por %p156, %p157
    %p160 = scmp.ne.s32.totalorder %s145, %s159
    %p161 = scmp.eq.s32.totalorder %s18, 0
    %p162 = por %p160, %p161
    %s163 = ssub.s32 %s20, %s27
    %s164 = ssub.s32 %s19, %s31
    %s165 = sor.u32 %s163, %s164
    %p166 = scmp.eq.s32.totalorder %s165, 0
    %s168 = sadd.s32 %s167, 1
    %s169 = scalar_select %p166, %s167, %s168
    %p172 = pneg %p166
    %p173 = scmp.eq.s32.totalorder %s12, 3
    %p174 = por %p172, %p173
    %p175 = scmp.ne.s32.totalorder %s167, %s170
    %p176 = scmp.eq.s32.totalorder %s12, 0
    %p177 = por %p175, %p176
    %p178 = scmp.ne.s32.totalorder %s167, %s170
    %p179 = scmp.eq.s32.totalorder %s17, 3
    %p180 = por %p178, %p179
    %p181 = scmp.ne.s32.totalorder %s170, %s171
    %p182 = scmp.eq.s32.totalorder %s17, 0
    %p183 = por %p181, %p182
    %p184 = scmp.ne.s32.totalorder %s170, %s171
    %p185 = scmp.eq.s32.totalorder %s18, 3
    %p186 = por %p184, %p185
    %p188 = scmp.ne.s32.totalorder %s171, %s187
    %p189 = scmp.eq.s32.totalorder %s18, 0
    %p190 = por %p188, %p189
    %p191 = scmp.le.s32.totalorder 1, %s12
    %p192 = scmp.lt.s32.totalorder %s12, 5
    %p193 = pnand %p191, %p192
    %p194 = pneg %p193
    // Predicated region
    $region9: #{rpn_head_forward.1} parent=5 // pred_check
      _
    $region10: #{rpn_head_forward.1} parent=5 // pred_check_branch
      %196 = sbr.rel (%p193) target = $region12
    $region11: #{rpn_head_forward.1} parent=5 // pred_region
      %s197 = ssub.s32 %s12, 1
      // Predicated region
      $region13: #{rpn_head_forward.1} parent=11 // pred_check
        %p198 = pneg %p71
      $region14: #{rpn_head_forward.1} parent=11 // pred_check_branch
        %200 = sbr.rel (%p198) target = $region16
      $region15: #{rpn_head_forward.1} parent=11 // pred_region
        _
      $region16: #{rpn_head_forward.1} parent=11 // pred_fallthru
        _
      // Predicated region
      $region17: #{rpn_head_forward.1} parent=11 // pred_check
        %p201 = pneg %p92
      $region18: #{rpn_head_forward.1} parent=11 // pred_check_branch
        %203 = sbr.rel (%p201) target = $region20
      $region19: #{rpn_head_forward.1} parent=11 // pred_region
        _
      $region20: #{rpn_head_forward.1} parent=11 // pred_fallthru
        _
      // Predicated region
      $region21: #{rpn_head_forward.1} parent=11 // pred_check
        %p204 = pneg %p113
      $region22: #{rpn_head_forward.1} parent=11 // pred_check_branch
        %206 = sbr.rel (%p204) target = $region24
      $region23: #{rpn_head_forward.1} parent=11 // pred_region
        _
      $region24: #{rpn_head_forward.1} parent=11 // pred_fallthru
        _
      // Predicated region
      $region25: #{rpn_head_forward.1} parent=11 // pred_check
        %p207 = pneg %p134
      $region26: #{rpn_head_forward.1} parent=11 // pred_check_branch
        %209 = sbr.rel (%p207) target = $region28
      $region27: #{rpn_head_forward.1} parent=11 // pred_region
        _
      $region28: #{rpn_head_forward.1} parent=11 // pred_fallthru
        _
      // Predicated region
      $region29: #{rpn_head_forward.1} parent=11 // pred_check
        %p210 = pneg %p155
      $region30: #{rpn_head_forward.1} parent=11 // pred_check_branch
        %212 = sbr.rel (%p210) target = $region32
      $region31: #{rpn_head_forward.1} parent=11 // pred_region
        _
      $region32: #{rpn_head_forward.1} parent=11 // pred_fallthru
        _
    $region12: #{rpn_head_forward.1} parent=5 // pred_fallthru
      _
    %p213 = scmp.lt.s32.totalorder %s12, 4
    // Predicated region
    $region33: #{rpn_head_forward.1} parent=5 // pred_check
      %p214 = pneg %p213
    $region34: #{rpn_head_forward.1} parent=5 // pred_check_branch
      %216 = sbr.rel (%p214) target = $region36
    $region35: #{rpn_head_forward.1} parent=5 // pred_region
      // Predicated region
      $region37: #{rpn_head_forward.1} parent=35 // pred_check
        %p217 = pneg %p44
      $region38: #{rpn_head_forward.1} parent=35 // pred_check_branch
        %219 = sbr.rel (%p217) target = $region40
      $region39: #{rpn_head_forward.1} parent=35 // pred_region
        %p220 = scmp.lt.s32.totalorder %s19, 1
        %s221 = scalar_select %p220, %s19, 1
        %s222 = smul.addr %s221, 3
        %s223 = smul.addr %s222, 4
        %s224 = scalar_lea.vmem %s0, %s223
      $region40: #{rpn_head_forward.1} parent=35 // pred_fallthru
        _
    $region36: #{rpn_head_forward.1} parent=5 // pred_fallthru
      _
    %p225 = scmp.le.s32.totalorder 1, %s12
    %p226 = scmp.lt.s32.totalorder %s12, 5
    %p227 = pnand %p225, %p226
    %p228 = pneg %p227
    // Predicated region
    $region41: #{rpn_head_forward.1} parent=5 // pred_check
      _
    $region42: #{rpn_head_forward.1} parent=5 // pred_check_branch
      %230 = sbr.rel (%p227) target = $region44
    $region43: #{rpn_head_forward.1} parent=5 // pred_region
      %s231 = ssub.s32 %s12, 1
      %p232 = scmp.lt.s32.totalorder %s21, 1
      %s233 = scalar_select %p232, %s21, 1
      %s234 = smul.addr %s233, 3
      %s235 = smul.addr %s234, 4
      %s236 = scalar_lea.vmem %s0, %s235
      %p237 = pneg %p50
      %p238 = pneg %p47
      %p239 = pneg %p71
      %p240 = pneg %p68
      %p241 = pneg %p92
      %p242 = pneg %p89
      %p243 = pneg %p113
      %p244 = pneg %p110
      %p245 = pneg %p134
      %p246 = pneg %p131
      %p247 = pneg %p155
      %p248 = pneg %p152
      %p249 = pneg %p183
      %p250 = pneg %p180
      %p251 = scmp.lt.s32.totalorder %s22, 1
      %s252 = scalar_select %p251, %s22, 1
      %p253 = scmp.lt.s32.totalorder %s21, 1
      %s254 = scalar_select %p253, %s21, 1
      %s255 = smul.addr %s254, 9
      %s256 = smul.addr %s252, 18
      %s257 = sadd.s32 %s255, %s256
      %s258 = smul.addr %s257, 8
      %s259 = scalar_lea.vmem %s6, %s258
      %p260 = scmp.lt.s32.totalorder %s21, 1
      %s261 = scalar_select %p260, %s21, 1
      %s262 = smul.addr %s261, 3
      %s263 = smul.addr %s262, 4
      %s264 = scalar_lea.vmem %s0, %s263
      %p265 = scmp.lt.s32.totalorder %s22, 1
      %s266 = scalar_select %p265, %s22, 1
      %p267 = scmp.lt.s32.totalorder %s21, 1
      %s268 = scalar_select %p267, %s21, 1
      %s269 = smul.addr %s268, 9
      %s270 = smul.addr %s266, 18
      %s271 = sadd.s32 %s269, %s270
      %s272 = smul.addr %s271, 8
      %s273 = scalar_lea.vmem %s6, %s272
      %p274 = scmp.eq.s32.totalorder %s22, 0
      // Predicated region
      $region45: #{rpn_head_forward.1} parent=43 // pred_check
        %p275 = pneg %p274
      $region46: #{rpn_head_forward.1} parent=43 // pred_check_branch
        %277 = sbr.rel (%p275) target = $region48
      $region47: #{rpn_head_forward.1} parent=43 // pred_region
        %v278 = vld [vmem:[%s264] sm:$0xff]
        %v279 = vld [vmem:[%s264 + $0x8] sm:$0xf]
        %280 = vst [vmem:[#allocation2] sm:$0xff] %v278
        %vm281 = vcmask 551936
        %282 = vst.msk [vmem:[#allocation2 + $0x8] sm:$0xf] %vm281, %v279
      $region48: #{rpn_head_forward.1} parent=43 // pred_fallthru
        _
      %v283 = vld [vmem:[#allocation2] sm:$0xff]
      %v284 = vld [vmem:[#allocation2 + $0x8] sm:$0xf]
      %v285 = vld [vmem:[%s5] sm:$0x7]
      %v288 = vcombine.high %v283, %v283
      %vm290 = vcmask 1048096
      %291 = vrot.lane.b32.xlu0 %v283, 68
      %v292 = vpop.permute.xlu0 %291
      %v293 = vsel %vm290, %v292, %v284
      %294 = vrot.lane.b32.xlu0 %v288, 68
      %v295 = vpop.permute.xlu0 %294
      %296 = vrot.lane.b32.xlu0 %v293, 68
      %v297 = vpop.permute.xlu0 %296
      %v298 = vsel %vm290, %v295, %v292
      %v299 = vsel %vm290, %v297, %v295
      %v300 = vld [vmem:[%s1] sm:$0xf]
      %s301 = scalar_lea.vmem %s1, 4
      %v302 = vld [vmem:[%s301] sm:$0xf]
      %306 = vrot.lane.b32.xlu0 %v293, 78
      %v307 = vpop.permute.xlu0 %306
      %308 = vrot.lane.b32.xlu0 %v298, 78
      %v309 = vpop.permute.xlu0 %308
      %310 = vrot.lane.b32.xlu0 %v299, 78
      %v311 = vpop.permute.xlu0 %310
      %vm312 = vcmask 637952
      %v313 = vsel %vm312, %v307, %v309
      %v314 = vsel %vm312, %v309, %v311
      %vm315 = vcmask 31744
      %v317 = vsel %vm315, %v302, 0
      %vm319 = vcmask 1043456
      %v320 = vsel %vm319, %v313, 0
      %v322 = vsel %vm319, %v314, 0
      %v324 = vsel %vm319, %v311, 0
      %326 = vmatprep.subr.mxu0 %v322
      %327 = vmatpush1.msra.mxu0 %v320
      %328 = vmatprep.subr.mxu0 0.0
      %329 = vmatpush1.msra.mxu0 0.0
      %330 = vmatprep.subr.mxu0 0.0
      %331 = vmatpush1.msra.mxu0 0.0
      %332 = vmatprep.subr.mxu0 0.0
      %333 = vmatpush1.msra.mxu0 0.0
      %334 = vmatprep.subr.mxu0 0.0
      %335 = vmatpush1.msra.mxu0 0.0
      %336 = vmatprep.subr.mxu0 0.0
      %337 = vmatpush1.msra.mxu0 0.0
      %338 = vmatprep.subr.mxu0 0.0
      %339 = vmatpush1.msra.mxu0 0.0
      %340 = vmatprep.subr.mxu0 0.0
      %341 = vmatpush1.msra.mxu0 0.0
      %342 = vmatprep.subr.mxu0 0.0
      %343 = vmatpush1.msra.mxu0 0.0
      %344 = vmatprep.subr.mxu0 0.0
      %345 = vmatpush1.msra.mxu0 0.0
      %346 = vmatprep.subr.mxu0 0.0
      %347 = vmatpush1.msra.mxu0 0.0
      %348 = vmatprep.subr.mxu0 0.0
      %349 = vmatpush1.msra.mxu0 0.0
      %350 = vmatprep.subr.mxu0 0.0
      %351 = vmatpush1.msra.mxu0 0.0
      %352 = vmatprep.subr.mxu0 0.0
      %353 = vmatpush1.msra.mxu0 0.0
      %354 = vmatprep.subr.mxu0 0.0
      %355 = vmatpush1.msra.mxu0 0.0
      %356 = vmatprep.subr.mxu0 0.0
      %357 = vmatpush1.msra.mxu0 0.0
      %358 = vmatprep.subr.mxu0 0.0
      %359 = vmatpush1.msra.mxu0 0.0
      %360 = vmatprep.subr.mxu0 0.0
      %361 = vmatpush1.msra.mxu0 0.0
      %362 = vmatprep.subr.mxu0 0.0
      %363 = vmatpush1.msra.mxu0 0.0
      %364 = vmatprep.subr.mxu0 0.0
      %365 = vmatpush1.msra.mxu0 0.0
      %366 = vmatprep.subr.mxu0 0.0
      %367 = vmatpush1.msra.mxu0 0.0
      %368 = vmatprep.subr.mxu0 0.0
      %369 = vmatpush1.msra.mxu0 0.0
      %370 = vmatprep.subr.mxu0 0.0
      %371 = vmatpush1.msra.mxu0 0.0
      %372 = vmatprep.subr.mxu0 0.0
      %373 = vmatpush1.msra.mxu0 0.0
      %374 = vmatprep.subr.mxu0 0.0
      %375 = vmatpush1.msra.mxu0 0.0
      %376 = vmatprep.subr.mxu0 0.0
      %377 = vmatpush1.msra.mxu0 0.0
      %378 = vmatprep.subr.mxu0 0.0
      %379 = vmatpush1.msra.mxu0 0.0
      %380 = vmatprep.subr.mxu0 0.0
      %381 = vmatpush1.msra.mxu0 0.0
      %382 = vmatprep.subr.mxu0 0.0
      %383 = vmatpush1.msra.mxu0 0.0
      %384 = vmatprep.subr.mxu0 0.0
      %385 = vmatpush1.msra.mxu0 0.0
      %386 = vmatprep.subr.mxu0 0.0
      %387 = vmatpush1.msra.mxu0 0.0
      %388 = vmatprep.subr.mxu0 0.0
      %389 = vmatpush1.msra.mxu0 0.0
      %390 = vmatprep.mubr.f32.mxu0 0.0
      %391 = vmatmul.mubr.f32.gmra.mrb[0].mxu0 %v317
      %v392 = vpop.f32.mrb[0].mxu0
      %v393 = vadd.f32 0.0, %v392
      %v394 = vpop.f32.mrb[0].mxu0
      %v395 = vadd.f32 0.0, %v394
      %396 = vdwg.mxu0
      %397 = vmatprep.subr.mxu0 0.0
      %398 = vmatpush1.msra.mxu0 %v324
      %399 = vmatprep.subr.mxu0 0.0
      %400 = vmatpush1.msra.mxu0 0.0
      %401 = vmatprep.subr.mxu0 0.0
      %402 = vmatpush1.msra.mxu0 0.0
      %403 = vmatprep.subr.mxu0 0.0
      %404 = vmatpush1.msra.mxu0 0.0
      %405 = vmatprep.subr.mxu0 0.0
      %406 = vmatpush1.msra.mxu0 0.0
      %407 = vmatprep.subr.mxu0 0.0
      %408 = vmatpush1.msra.mxu0 0.0
      %409 = vmatprep.subr.mxu0 0.0
      %410 = vmatpush1.msra.mxu0 0.0
      %411 = vmatprep.subr.mxu0 0.0
      %412 = vmatpush1.msra.mxu0 0.0
      %413 = vmatprep.subr.mxu0 0.0
      %414 = vmatpush1.msra.mxu0 0.0
      %415 = vmatprep.subr.mxu0 0.0
      %416 = vmatpush1.msra.mxu0 0.0
      %417 = vmatprep.subr.mxu0 0.0
      %418 = vmatpush1.msra.mxu0 0.0
      %419 = vmatprep.subr.mxu0 0.0
      %420 = vmatpush1.msra.mxu0 0.0
      %421 = vmatprep.subr.mxu0 0.0
      %422 = vmatpush1.msra.mxu0 0.0
      %423 = vmatprep.subr.mxu0 0.0
      %424 = vmatpush1.msra.mxu0 0.0
      %425 = vmatprep.subr.mxu0 0.0
      %426 = vmatpush1.msra.mxu0 0.0
      %427 = vmatprep.subr.mxu0 0.0
      %428 = vmatpush1.msra.mxu0 0.0
      %429 = vmatprep.subr.mxu0 0.0
      %430 = vmatpush1.msra.mxu0 0.0
      %431 = vmatprep.subr.mxu0 0.0
      %432 = vmatpush1.msra.mxu0 0.0
      %433 = vmatprep.subr.mxu0 0.0
      %434 = vmatpush1.msra.mxu0 0.0
      %435 = vmatprep.subr.mxu0 0.0
      %436 = vmatpush1.msra.mxu0 0.0
      %437 = vmatprep.subr.mxu0 0.0
      %438 = vmatpush1.msra.mxu0 0.0
      %439 = vmatprep.subr.mxu0 0.0
      %440 = vmatpush1.msra.mxu0 0.0
      %441 = vmatprep.subr.mxu0 0.0
      %442 = vmatpush1.msra.mxu0 0.0
      %443 = vmatprep.subr.mxu0 0.0
      %444 = vmatpush1.msra.mxu0 0.0
      %445 = vmatprep.subr.mxu0 0.0
      %446 = vmatpush1.msra.mxu0 0.0
      %447 = vmatprep.subr.mxu0 0.0
      %448 = vmatpush1.msra.mxu0 0.0
      %449 = vmatprep.subr.mxu0 0.0
      %450 = vmatpush1.msra.mxu0 0.0
      %451 = vmatprep.subr.mxu0 0.0
      %452 = vmatpush1.msra.mxu0 0.0
      %453 = vmatprep.subr.mxu0 0.0
      %454 = vmatpush1.msra.mxu0 0.0
      %455 = vmatprep.subr.mxu0 0.0
      %456 = vmatpush1.msra.mxu0 0.0
      %457 = vmatprep.subr.mxu0 0.0
      %458 = vmatpush1.msra.mxu0 0.0
      %459 = vmatprep.subr.mxu0 0.0
      %460 = vmatpush1.msra.mxu0 0.0
      %461 = vmatprep.mubr.f32.mxu0 0.0
      %462 = vmatmul.mubr.f32.gmra.mrb[0].mxu0 %v317
      %v463 = vpop.f32.mrb[0].mxu0
      %v464 = vadd.f32 0.0, %v463
      %v465 = vpop.f32.mrb[0].mxu0
      %466 = vdwg.mxu0
      %467 = vrot.lane.b32.xlu0 %v293, 79
      %v468 = vpop.permute.xlu0 %467
      %469 = vrot.lane.b32.xlu0 %v298, 79
      %v470 = vpop.permute.xlu0 %469
      %471 = vrot.lane.b32.xlu0 %v299, 79
      %v472 = vpop.permute.xlu0 %471
      %vm473 = vcmask 646144
      %v474 = vsel %vm473, %v468, %v470
      %v475 = vsel %vm473, %v470, %v472
      %v477 = vsel %vm315, %v300, 0
      %v479 = vsel %vm319, %v474, 0
      %v481 = vsel %vm319, %v475, 0
      %v483 = vsel %vm319, %v472, 0
      %485 = vmatprep.subr.mxu0 %v481
      %486 = vmatpush1.msra.mxu0 %v479
      %487 = vmatprep.subr.mxu0 0.0
      %488 = vmatpush1.msra.mxu0 0.0
      %489 = vmatprep.subr.mxu0 0.0
      %490 = vmatpush1.msra.mxu0 0.0
      %491 = vmatprep.subr.mxu0 0.0
      %492 = vmatpush1.msra.mxu0 0.0
      %493 = vmatprep.subr.mxu0 0.0
      %494 = vmatpush1.msra.mxu0 0.0
      %495 = vmatprep.subr.mxu0 0.0
      %496 = vmatpush1.msra.mxu0 0.0
      %497 = vmatprep.subr.mxu0 0.0
      %498 = vmatpush1.msra.mxu0 0.0
      %499 = vmatprep.subr.mxu0 0.0
      %500 = vmatpush1.msra.mxu0 0.0
      %501 = vmatprep.subr.mxu0 0.0
      %502 = vmatpush1.msra.mxu0 0.0
      %503 = vmatprep.subr.mxu0 0.0
      %504 = vmatpush1.msra.mxu0 0.0
      %505 = vmatprep.subr.mxu0 0.0
      %506 = vmatpush1.msra.mxu0 0.0
      %507 = vmatprep.subr.mxu0 0.0
      %508 = vmatpush1.msra.mxu0 0.0
      %509 = vmatprep.subr.mxu0 0.0
      %510 = vmatpush1.msra.mxu0 0.0
      %511 = vmatprep.subr.mxu0 0.0
      %512 = vmatpush1.msra.mxu0 0.0
      %513 = vmatprep.subr.mxu0 0.0
      %514 = vmatpush1.msra.mxu0 0.0
      %515 = vmatprep.subr.mxu0 0.0
      %516 = vmatpush1.msra.mxu0 0.0
      %517 = vmatprep.subr.mxu0 0.0
      %518 = vmatpush1.msra.mxu0 0.0
      %519 = vmatprep.subr.mxu0 0.0
      %520 = vmatpush1.msra.mxu0 0.0
      %521 = vmatprep.subr.mxu0 0.0
      %522 = vmatpush1.msra.mxu0 0.0
      %523 = vmatprep.subr.mxu0 0.0
      %524 = vmatpush1.msra.mxu0 0.0
      %525 = vmatprep.subr.mxu0 0.0
      %526 = vmatpush1.msra.mxu0 0.0
      %527 = vmatprep.subr.mxu0 0.0
      %528 = vmatpush1.msra.mxu0 0.0
      %529 = vmatprep.subr.mxu0 0.0
      %530 = vmatpush1.msra.mxu0 0.0
      %531 = vmatprep.subr.mxu0 0.0
      %532 = vmatpush1.msra.mxu0 0.0
      %533 = vmatprep.subr.mxu0 0.0
      %534 = vmatpush1.msra.mxu0 0.0
      %535 = vmatprep.subr.mxu0 0.0
      %536 = vmatpush1.msra.mxu0 0.0
      %537 = vmatprep.subr.mxu0 0.0
      %538 = vmatpush1.msra.mxu0 0.0
      %539 = vmatprep.subr.mxu0 0.0
      %540 = vmatpush1.msra.mxu0 0.0
      %541 = vmatprep.subr.mxu0 0.0
      %542 = vmatpush1.msra.mxu0 0.0
      %543 = vmatprep.subr.mxu0 0.0
      %544 = vmatpush1.msra.mxu0 0.0
      %545 = vmatprep.subr.mxu0 0.0
      %546 = vmatpush1.msra.mxu0 0.0
      %547 = vmatprep.subr.mxu0 0.0
      %548 = vmatpush1.msra.mxu0 0.0
      %549 = vmatprep.mubr.f32.mxu0 0.0
      %550 = vmatmul.mubr.f32.gmra.mrb[0].mxu0 %v477
      %v551 = vpop.f32.mrb[0].mxu0
      %v552 = vadd.f32 %v393, %v551
      %v553 = vpop.f32.mrb[0].mxu0
      %v554 = vadd.f32 %v395, %v553
      %555 = vdwg.mxu0
      %556 = vmatprep.subr.mxu0 0.0
      %557 = vmatpush1.msra.mxu0 %v483
      %558 = vmatprep.subr.mxu0 0.0
      %559 = vmatpush1.msra.mxu0 0.0
      %560 = vmatprep.subr.mxu0 0.0
      %561 = vmatpush1.msra.mxu0 0.0
      %562 = vmatprep.subr.mxu0 0.0
      %563 = vmatpush1.msra.mxu0 0.0
      %564 = vmatprep.subr.mxu0 0.0
      %565 = vmatpush1.msra.mxu0 0.0
      %566 = vmatprep.subr.mxu0 0.0
      %567 = vmatpush1.msra.mxu0 0.0
      %568 = vmatprep.subr.mxu0 0.0
      %569 = vmatpush1.msra.mxu0 0.0
      %570 = vmatprep.subr.mxu0 0.0
      %571 = vmatpush1.msra.mxu0 0.0
      %572 = vmatprep.subr.mxu0 0.0
      %573 = vmatpush1.msra.mxu0 0.0
      %574 = vmatprep.subr.mxu0 0.0
      %575 = vmatpush1.msra.mxu0 0.0
      %576 = vmatprep.subr.mxu0 0.0
      %577 = vmatpush1.msra.mxu0 0.0
      %578 = vmatprep.subr.mxu0 0.0
      %579 = vmatpush1.msra.mxu0 0.0
      %580 = vmatprep.subr.mxu0 0.0
      %581 = vmatpush1.msra.mxu0 0.0
      %582 = vmatprep.subr.mxu0 0.0
      %583 = vmatpush1.msra.mxu0 0.0
      %584 = vmatprep.subr.mxu0 0.0
      %585 = vmatpush1.msra.mxu0 0.0
      %586 = vmatprep.subr.mxu0 0.0
      %587 = vmatpush1.msra.mxu0 0.0
      %588 = vmatprep.subr.mxu0 0.0
      %589 = vmatpush1.msra.mxu0 0.0
      %590 = vmatprep.subr.mxu0 0.0
      %591 = vmatpush1.msra.mxu0 0.0
      %592 = vmatprep.subr.mxu0 0.0
      %593 = vmatpush1.msra.mxu0 0.0
      %594 = vmatprep.subr.mxu0 0.0
      %595 = vmatpush1.msra.mxu0 0.0
      %596 = vmatprep.subr.mxu0 0.0
      %597 = vmatpush1.msra.mxu0 0.0
      %598 = vmatprep.subr.mxu0 0.0
      %599 = vmatpush1.msra.mxu0 0.0
      %600 = vmatprep.subr.mxu0 0.0
      %601 = vmatpush1.msra.mxu0 0.0
      %602 = vmatprep.subr.mxu0 0.0
      %603 = vmatpush1.msra.mxu0 0.0
      %604 = vmatprep.subr.mxu0 0.0
      %605 = vmatpush1.msra.mxu0 0.0
      %606 = vmatprep.subr.mxu0 0.0
      %607 = vmatpush1.msra.mxu0 0.0
      %608 = vmatprep.subr.mxu0 0.0
      %609 = vmatpush1.msra.mxu0 0.0
      %610 = vmatprep.subr.mxu0 0.0
      %611 = vmatpush1.msra.mxu0 0.0
      %612 = vmatprep.subr.mxu0 0.0
      %613 = vmatpush1.msra.mxu0 0.0
      %614 = vmatprep.subr.mxu0 0.0
      %615 = vmatpush1.msra.mxu0 0.0
      %616 = vmatprep.subr.mxu0 0.0
      %617 = vmatpush1.msra.mxu0 0.0
      %618 = vmatprep.subr.mxu0 0.0
      %619 = vmatpush1.msra.mxu0 0.0
      %620 = vmatprep.mubr.f32.mxu0 0.0
      %621 = vmatmul.mubr.f32.gmra.mrb[0].mxu0 %v477
      %v622 = vpop.f32.mrb[0].mxu0
      %v623 = vadd.f32 %v464, %v622
      %v624 = vpop.f32.mrb[0].mxu0
      %625 = vdwg.mxu0
      %s626 = scalar_lea.vmem %s1, 8
      %v627 = vld [vmem:[%s626] sm:$0xf]
      %628 = vrot.lane.b32.xlu0 %v293, 77
      %v629 = vpop.permute.xlu0 %628
      %630 = vrot.lane.b32.xlu0 %v298, 77
      %v631 = vpop.permute.xlu0 %630
      %632 = vrot.lane.b32.xlu0 %v299, 77
      %v633 = vpop.permute.xlu0 %632
      %vm634 = vcmask 629760
      %v635 = vsel %vm634, %v629, %v631
      %v636 = vsel %vm634, %v631, %v633
      %v638 = vsel %vm315, %v627, 0
      %v640 = vsel %vm319, %v635, 0
      %v642 = vsel %vm319, %v636, 0
      %v644 = vsel %vm319, %v633, 0
      %646 = vmatprep.subr.mxu0 %v642
      %647 = vmatpush1.msra.mxu0 %v640
      %648 = vmatprep.subr.mxu0 0.0
      %649 = vmatpush1.msra.mxu0 0.0
      %650 = vmatprep.subr.mxu0 0.0
      %651 = vmatpush1.msra.mxu0 0.0
      %652 = vmatprep.subr.mxu0 0.0
      %653 = vmatpush1.msra.mxu0 0.0
      %654 = vmatprep.subr.mxu0 0.0
      %655 = vmatpush1.msra.mxu0 0.0
      %656 = vmatprep.subr.mxu0 0.0
      %657 = vmatpush1.msra.mxu0 0.0
      %658 = vmatprep.subr.mxu0 0.0
      %659 = vmatpush1.msra.mxu0 0.0
      %660 = vmatprep.subr.mxu0 0.0
      %661 = vmatpush1.msra.mxu0 0.0
      %662 = vmatprep.subr.mxu0 0.0
      %663 = vmatpush1.msra.mxu0 0.0
      %664 = vmatprep.subr.mxu0 0.0
      %665 = vmatpush1.msra.mxu0 0.0
      %666 = vmatprep.subr.mxu0 0.0
      %667 = vmatpush1.msra.mxu0 0.0
      %668 = vmatprep.subr.mxu0 0.0
      %669 = vmatpush1.msra.mxu0 0.0
      %670 = vmatprep.subr.mxu0 0.0
      %671 = vmatpush1.msra.mxu0 0.0
      %672 = vmatprep.subr.mxu0 0.0
      %673 = vmatpush1.msra.mxu0 0.0
      %674 = vmatprep.subr.mxu0 0.0
      %675 = vmatpush1.msra.mxu0 0.0
      %676 = vmatprep.subr.mxu0 0.0
      %677 = vmatpush1.msra.mxu0 0.0
      %678 = vmatprep.subr.mxu0 0.0
      %679 = vmatpush1.msra.mxu0 0.0
      %680 = vmatprep.subr.mxu0 0.0
      %681 = vmatpush1.msra.mxu0 0.0
      %682 = vmatprep.subr.mxu0 0.0
      %683 = vmatpush1.msra.mxu0 0.0
      %684 = vmatprep.subr.mxu0 0.0
      %685 = vmatpush1.msra.mxu0 0.0
      %686 = vmatprep.subr.mxu0 0.0
      %687 = vmatpush1.msra.mxu0 0.0
      %688 = vmatprep.subr.mxu0 0.0
      %689 = vmatpush1.msra.mxu0 0.0
      %690 = vmatprep.subr.mxu0 0.0
      %691 = vmatpush1.msra.mxu0 0.0
      %692 = vmatprep.subr.mxu0 0.0
      %693 = vmatpush1.msra.mxu0 0.0
      %694 = vmatprep.subr.mxu0 0.0
      %695 = vmatpush1.msra.mxu0 0.0
      %696 = vmatprep.subr.mxu0 0.0
      %697 = vmatpush1.msra.mxu0 0.0
      %698 = vmatprep.subr.mxu0 0.0
      %699 = vmatpush1.msra.mxu0 0.0
      %700 = vmatprep.subr.mxu0 0.0
      %701 = vmatpush1.msra.mxu0 0.0
      %702 = vmatprep.subr.mxu0 0.0
      %703 = vmatpush1.msra.mxu0 0.0
      %704 = vmatprep.subr.mxu0 0.0
      %705 = vmatpush1.msra.mxu0 0.0
      %706 = vmatprep.subr.mxu0 0.0
      %707 = vmatpush1.msra.mxu0 0.0
      %708 = vmatprep.subr.mxu0 0.0
      %709 = vmatpush1.msra.mxu0 0.0
      %710 = vmatprep.mubr.f32.mxu0 0.0
      %711 = vmatmul.mubr.f32.gmra.mrb[0].mxu0 %v638
      %v712 = vpop.f32.mrb[0].mxu0
      %v713 = vadd.f32 0.0, %v712
      %v714 = vpop.f32.mrb[0].mxu0
      %v715 = vadd.f32 0.0, %v714
      %716 = vdwg.mxu0
      %717 = vmatprep.subr.mxu0 0.0
      %718 = vmatpush1.msra.mxu0 %v644
      %719 = vmatprep.subr.mxu0 0.0
      %720 = vmatpush1.msra.mxu0 0.0
      %721 = vmatprep.subr.mxu0 0.0
      %722 = vmatpush1.msra.mxu0 0.0
      %723 = vmatprep.subr.mxu0 0.0
      %724 = vmatpush1.msra.mxu0 0.0
      %725 = vmatprep.subr.mxu0 0.0
      %726 = vmatpush1.msra.mxu0 0.0
      %727 = vmatprep.subr.mxu0 0.0
      %728 = vmatpush1.msra.mxu0 0.0
      %729 = vmatprep.subr.mxu0 0.0
      %730 = vmatpush1.msra.mxu0 0.0
      %731 = vmatprep.subr.mxu0 0.0
      %732 = vmatpush1.msra.mxu0 0.0
      %733 = vmatprep.subr.mxu0 0.0
      %734 = vmatpush1.msra.mxu0 0.0
      %735 = vmatprep.subr.mxu0 0.0
      %736 = vmatpush1.msra.mxu0 0.0
      %737 = vmatprep.subr.mxu0 0.0
      %738 = vmatpush1.msra.mxu0 0.0
      %739 = vmatprep.subr.mxu0 0.0
      %740 = vmatpush1.msra.mxu0 0.0
      %741 = vmatprep.subr.mxu0 0.0
      %742 = vmatpush1.msra.mxu0 0.0
      %743 = vmatprep.subr.mxu0 0.0
      %744 = vmatpush1.msra.mxu0 0.0
      %745 = vmatprep.subr.mxu0 0.0
      %746 = vmatpush1.msra.mxu0 0.0
      %747 = vmatprep.subr.mxu0 0.0
      %748 = vmatpush1.msra.mxu0 0.0
      %749 = vmatprep.subr.mxu0 0.0
      %750 = vmatpush1.msra.mxu0 0.0
      %751 = vmatprep.subr.mxu0 0.0
      %752 = vmatpush1.msra.mxu0 0.0
      %753 = vmatprep.subr.mxu0 0.0
      %754 = vmatpush1.msra.mxu0 0.0
      %755 = vmatprep.subr.mxu0 0.0
      %756 = vmatpush1.msra.mxu0 0.0
      %757 = vmatprep.subr.mxu0 0.0
      %758 = vmatpush1.msra.mxu0 0.0
      %759 = vmatprep.subr.mxu0 0.0
      %760 = vmatpush1.msra.mxu0 0.0
      %761 = vmatprep.subr.mxu0 0.0
      %762 = vmatpush1.msra.mxu0 0.0
      %763 = vmatprep.subr.mxu0 0.0
      %764 = vmatpush1.msra.mxu0 0.0
      %765 = vmatprep.subr.mxu0 0.0
      %766 = vmatpush1.msra.mxu0 0.0
      %767 = vmatprep.subr.mxu0 0.0
      %768 = vmatpush1.msra.mxu0 0.0
      %769 = vmatprep.subr.mxu0 0.0
      %770 = vmatpush1.msra.mxu0 0.0
      %771 = vmatprep.subr.mxu0 0.0
      %772 = vmatpush1.msra.mxu0 0.0
      %773 = vmatprep.subr.mxu0 0.0
      %774 = vmatpush1.msra.mxu0 0.0
      %775 = vmatprep.subr.mxu0 0.0
      %776 = vmatpush1.msra.mxu0 0.0
      %777 = vmatprep.subr.mxu0 0.0
      %778 = vmatpush1.msra.mxu0 0.0
      %779 = vmatprep.subr.mxu0 0.0
      %780 = vmatpush1.msra.mxu0 0.0
      %781 = vmatprep.mubr.f32.mxu0 0.0
      %782 = vmatmul.mubr.f32.gmra.mrb[0].mxu0 %v638
      %v783 = vpop.f32.mrb[0].mxu0
      %v784 = vadd.f32 0.0, %v783
      %v785 = vpop.f32.mrb[0].mxu0
      %786 = vdwg.mxu0
      %v787 = vadd.f32 %v552, %v713
      %v788 = vadd.f32 %v554, %v715
      %v789 = vadd.f32 %v623, %v784
      %s790 = scalar_lea.vmem %s1, 12
      %v791 = vld [vmem:[%s790] sm:$0xf]
      %793 = vrot.lane.b32.xlu0 %v293, 61
      %v794 = vpop.permute.xlu0 %793
      %795 = vrot.lane.b32.xlu0 %v298, 61
      %v796 = vpop.permute.xlu0 %795
      %797 = vrot.lane.b32.xlu0 %v299, 61
      %v798 = vpop.permute.xlu0 %797
      %799 = vrot.lane.b32.xlu0 %v297, 61
      %v800 = vpop.permute.xlu0 %799
      %vm801 = vcmask 498688
      %v802 = vsel %vm801, %v794, %v796
      %v803 = vsel %vm801, %v796, %v798
      %v804 = vsel %vm801, %v798, %v800
      %v806 = vsel %vm315, %v791, 0
      %v808 = vsel %vm319, %v802, 0
      %v810 = vsel %vm319, %v803, 0
      %v812 = vsel %vm319, %v804, 0
      %814 = vmatprep.subr.mxu0 %v810
      %815 = vmatpush1.msra.mxu0 %v808
      %816 = vmatprep.subr.mxu0 0.0
      %817 = vmatpush1.msra.mxu0 0.0
      %818 = vmatprep.subr.mxu0 0.0
      %819 = vmatpush1.msra.mxu0 0.0
      %820 = vmatprep.subr.mxu0 0.0
      %821 = vmatpush1.msra.mxu0 0.0
      %822 = vmatprep.subr.mxu0 0.0
      %823 = vmatpush1.msra.mxu0 0.0
      %824 = vmatprep.subr.mxu0 0.0
      %825 = vmatpush1.msra.mxu0 0.0
      %826 = vmatprep.subr.mxu0 0.0
      %827 = vmatpush1.msra.mxu0 0.0
      %828 = vmatprep.subr.mxu0 0.0
      %829 = vmatpush1.msra.mxu0 0.0
      %830 = vmatprep.subr.mxu0 0.0
      %831 = vmatpush1.msra.mxu0 0.0
      %832 = vmatprep.subr.mxu0 0.0
      %833 = vmatpush1.msra.mxu0 0.0
      %834 = vmatprep.subr.mxu0 0.0
      %835 = vmatpush1.msra.mxu0 0.0
      %836 = vmatprep.subr.mxu0 0.0
      %837 = vmatpush1.msra.mxu0 0.0
      %838 = vmatprep.subr.mxu0 0.0
      %839 = vmatpush1.msra.mxu0 0.0
      %840 = vmatprep.subr.mxu0 0.0
      %841 = vmatpush1.msra.mxu0 0.0
      %842 = vmatprep.subr.mxu0 0.0
      %843 = vmatpush1.msra.mxu0 0.0
      %844 = vmatprep.subr.mxu0 0.0
      %845 = vmatpush1.msra.mxu0 0.0
      %846 = vmatprep.subr.mxu0 0.0
      %847 = vmatpush1.msra.mxu0 0.0
      %848 = vmatprep.subr.mxu0 0.0
      %849 = vmatpush1.msra.mxu0 0.0
      %850 = vmatprep.subr.mxu0 0.0
      %851 = vmatpush1.msra.mxu0 0.0
      %852 = vmatprep.subr.mxu0 0.0
      %853 = vmatpush1.msra.mxu0 0.0
      %854 = vmatprep.subr.mxu0 0.0
      %855 = vmatpush1.msra.mxu0 0.0
      %856 = vmatprep.subr.mxu0 0.0
      %857 = vmatpush1.msra.mxu0 0.0
      %858 = vmatprep.subr.mxu0 0.0
      %859 = vmatpush1.msra.mxu0 0.0
      %860 = vmatprep.subr.mxu0 0.0
      %861 = vmatpush1.msra.mxu0 0.0
      %862 = vmatprep.subr.mxu0 0.0
      %863 = vmatpush1.msra.mxu0 0.0
      %864 = vmatprep.subr.mxu0 0.0
      %865 = vmatpush1.msra.mxu0 0.0
      %866 = vmatprep.subr.mxu0 0.0
      %867 = vmatpush1.msra.mxu0 0.0
      %868 = vmatprep.subr.mxu0 0.0
      %869 = vmatpush1.msra.mxu0 0.0
      %870 = vmatprep.subr.mxu0 0.0
      %871 = vmatpush1.msra.mxu0 0.0
      %872 = vmatprep.subr.mxu0 0.0
      %873 = vmatpush1.msra.mxu0 0.0
      %874 = vmatprep.subr.mxu0 0.0
      %875 = vmatpush1.msra.mxu0 0.0
      %876 = vmatprep.subr.mxu0 0.0
      %877 = vmatpush1.msra.mxu0 0.0
      %878 = vmatprep.mubr.f32.mxu0 0.0
      %879 = vmatmul.mubr.f32.gmra.mrb[0].mxu0 %v806
      %v880 = vpop.f32.mrb[0].mxu0
      %v881 = vadd.f32 0.0, %v880
      %v882 = vpop.f32.mrb[0].mxu0
      %v883 = vadd.f32 0.0, %v882
      %884 = vdwg.mxu0
      %885 = vmatprep.subr.mxu0 0.0
      %886 = vmatpush1.msra.mxu0 %v812
      %887 = vmatprep.subr.mxu0 0.0
      %888 = vmatpush1.msra.mxu0 0.0
      %889 = vmatprep.subr.mxu0 0.0
      %890 = vmatpush1.msra.mxu0 0.0
      %891 = vmatprep.subr.mxu0 0.0
      %892 = vmatpush1.msra.mxu0 0.0
      %893 = vmatprep.subr.mxu0 0.0
      %894 = vmatpush1.msra.mxu0 0.0
      %895 = vmatprep.subr.mxu0 0.0
      %896 = vmatpush1.msra.mxu0 0.0
      %897 = vmatprep.subr.mxu0 0.0
      %898 = vmatpush1.msra.mxu0 0.0
      %899 = vmatprep.subr.mxu0 0.0
      %900 = vmatpush1.msra.mxu0 0.0
      %901 = vmatprep.subr.mxu0 0.0
      %902 = vmatpush1.msra.mxu0 0.0
      %903 = vmatprep.subr.mxu0 0.0
      %904 = vmatpush1.msra.mxu0 0.0
      %905 = vmatprep.subr.mxu0 0.0
      %906 = vmatpush1.msra.mxu0 0.0
      %907 = vmatprep.subr.mxu0 0.0
      %908 = vmatpush1.msra.mxu0 0.0
      %909 = vmatprep.subr.mxu0 0.0
      %910 = vmatpush1.msra.mxu0 0.0
      %911 = vmatprep.subr.mxu0 0.0
      %912 = vmatpush1.msra.mxu0 0.0
      %913 = vmatprep.subr.mxu0 0.0
      %914 = vmatpush1.msra.mxu0 0.0
      %915 = vmatprep.subr.mxu0 0.0
      %916 = vmatpush1.msra.mxu0 0.0
      %917 = vmatprep.subr.mxu0 0.0
      %918 = vmatpush1.msra.mxu0 0.0
      %919 = vmatprep.subr.mxu0 0.0
      %920 = vmatpush1.msra.mxu0 0.0
      %921 = vmatprep.subr.mxu0 0.0
      %922 = vmatpush1.msra.mxu0 0.0
      %923 = vmatprep.subr.mxu0 0.0
      %924 = vmatpush1.msra.mxu0 0.0
      %925 = vmatprep.subr.mxu0 0.0
      %926 = vmatpush1.msra.mxu0 0.0
      %927 = vmatprep.subr.mxu0 0.0
      %928 = vmatpush1.msra.mxu0 0.0
      %929 = vmatprep.subr.mxu0 0.0
      %930 = vmatpush1.msra.mxu0 0.0
      %931 = vmatprep.subr.mxu0 0.0
      %932 = vmatpush1.msra.mxu0 0.0
      %933 = vmatprep.subr.mxu0 0.0
      %934 = vmatpush1.msra.mxu0 0.0
      %935 = vmatprep.subr.mxu0 0.0
      %936 = vmatpush1.msra.mxu0 0.0
      %937 = vmatprep.subr.mxu0 0.0
      %938 = vmatpush1.msra.mxu0 0.0
      %939 = vmatprep.subr.mxu0 0.0
      %940 = vmatpush1.msra.mxu0 0.0
      %941 = vmatprep.subr.mxu0 0.0
      %942 = vmatpush1.msra.mxu0 0.0
      %943 = vmatprep.subr.mxu0 0.0
      %944 = vmatpush1.msra.mxu0 0.0
      %945 = vmatprep.subr.mxu0 0.0
      %946 = vmatpush1.msra.mxu0 0.0
      %947 = vmatprep.subr.mxu0 0.0
      %948 = vmatpush1.msra.mxu0 0.0
      %949 = vmatprep.mubr.f32.mxu0 0.0
      %950 = vmatmul.mubr.f32.gmra.mrb[0].mxu0 %v806
      %v951 = vpop.f32.mrb[0].mxu0
      %v952 = vadd.f32 0.0, %v951
      %v953 = vpop.f32.mrb[0].mxu0
      %954 = vdwg.mxu0
      %v955 = vadd.f32 %v787, %v881
      %v956 = vadd.f32 %v788, %v883
      %v957 = vadd.f32 %v789, %v952
      %s958 = scalar_lea.vmem %s1, 16
      %v959 = vld [vmem:[%s958] sm:$0xf]
      %v961 = vsel %vm315, %v959, 0
      %v963 = vsel %vm319, %v283, 0
      %v965 = vsel %vm319, %v288, 0
      %v967 = vsel %vm319, %v284, 0
      %969 = vmatprep.subr.mxu0 %v965
      %970 = vmatpush1.msra.mxu0 %v963
      %971 = vmatprep.subr.mxu0 0.0
      %972 = vmatpush1.msra.mxu0 0.0
      %973 = vmatprep.subr.mxu0 0.0
      %974 = vmatpush1.msra.mxu0 0.0
      %975 = vmatprep.subr.mxu0 0.0
      %976 = vmatpush1.msra.mxu0 0.0
      %977 = vmatprep.subr.mxu0 0.0
      %978 = vmatpush1.msra.mxu0 0.0
      %979 = vmatprep.subr.mxu0 0.0
      %980 = vmatpush1.msra.mxu0 0.0
      %981 = vmatprep.subr.mxu0 0.0
      %982 = vmatpush1.msra.mxu0 0.0
      %983 = vmatprep.subr.mxu0 0.0
      %984 = vmatpush1.msra.mxu0 0.0
      %985 = vmatprep.subr.mxu0 0.0
      %986 = vmatpush1.msra.mxu0 0.0
      %987 = vmatprep.subr.mxu0 0.0
      %988 = vmatpush1.msra.mxu0 0.0
      %989 = vmatprep.subr.mxu0 0.0
      %990 = vmatpush1.msra.mxu0 0.0
      %991 = vmatprep.subr.mxu0 0.0
      %992 = vmatpush1.msra.mxu0 0.0
      %993 = vmatprep.subr.mxu0 0.0
      %994 = vmatpush1.msra.mxu0 0.0
      %995 = vmatprep.subr.mxu0 0.0
      %996 = vmatpush1.msra.mxu0 0.0
      %997 = vmatprep.subr.mxu0 0.0
      %998 = vmatpush1.msra.mxu0 0.0
      %999 = vmatprep.subr.mxu0 0.0
      %1000 = vmatpush1.msra.mxu0 0.0
      %1001 = vmatprep.subr.mxu0 0.0
      %1002 = vmatpush1.msra.mxu0 0.0
      %1003 = vmatprep.subr.mxu0 0.0
      %1004 = vmatpush1.msra.mxu0 0.0
      %1005 = vmatprep.subr.mxu0 0.0
      %1006 = vmatpush1.msra.mxu0 0.0
      %1007 = vmatprep.subr.mxu0 0.0
      %1008 = vmatpush1.msra.mxu0 0.0
      %1009 = vmatprep.subr.mxu0 0.0
      %1010 = vmatpush1.msra.mxu0 0.0
      %1011 = vmatprep.subr.mxu0 0.0
      %1012 = vmatpush1.msra.mxu0 0.0
      %1013 = vmatprep.subr.mxu0 0.0
      %1014 = vmatpush1.msra.mxu0 0.0
      %1015 = vmatprep.subr.mxu0 0.0
      %1016 = vmatpush1.msra.mxu0 0.0
      %1017 = vmatprep.subr.mxu0 0.0
      %1018 = vmatpush1.msra.mxu0 0.0
      %1019 = vmatprep.subr.mxu0 0.0
      %1020 = vmatpush1.msra.mxu0 0.0
      %1021 = vmatprep.subr.mxu0 0.0
      %1022 = vmatpush1.msra.mxu0 0.0
      %1023 = vmatprep.subr.mxu0 0.0
      %1024 = vmatpush1.msra.mxu0 0.0
      %1025 = vmatprep.subr.mxu0 0.0
      %1026 = vmatpush1.msra.mxu0 0.0
      %1027 = vmatprep.subr.mxu0 0.0
      %1028 = vmatpush1.msra.mxu0 0.0
      %1029 = vmatprep.subr.mxu0 0.0
      %1030 = vmatpush1.msra.mxu0 0.0
      %1031 = vmatprep.subr.mxu0 0.0
      %1032 = vmatpush1.msra.mxu0 0.0
      %1033 = vmatprep.mubr.f32.mxu0 0.0
      %1034 = vmatmul.mubr.f32.gmra.mrb[0].mxu0 %v961
      %v1035 = vpop.f32.mrb[0].mxu0
      %v1036 = vadd.f32 0.0, %v1035
      %v1037 = vpop.f32.mrb[0].mxu0
      %v1038 = vadd.f32 0.0, %v1037
      %1039 = vdwg.mxu0
      %1040 = vmatprep.subr.mxu0 0.0
      %1041 = vmatpush1.msra.mxu0 %v967
      %1042 = vmatprep.subr.mxu0 0.0
      %1043 = vmatpush1.msra.mxu0 0.0
      %1044 = vmatprep.subr.mxu0 0.0
      %1045 = vmatpush1.msra.mxu0 0.0
      %1046 = vmatprep.subr.mxu0 0.0
      %1047 = vmatpush1.msra.mxu0 0.0
      %1048 = vmatprep.subr.mxu0 0.0
      %1049 = vmatpush1.msra.mxu0 0.0
      %1050 = vmatprep.subr.mxu0 0.0
      %1051 = vmatpush1.msra.mxu0 0.0
      %1052 = vmatprep.subr.mxu0 0.0
      %1053 = vmatpush1.msra.mxu0 0.0
      %1054 = vmatprep.subr.mxu0 0.0
      %1055 = vmatpush1.msra.mxu0 0.0
      %1056 = vmatprep.subr.mxu0 0.0
      %1057 = vmatpush1.msra.mxu0 0.0
      %1058 = vmatprep.subr.mxu0 0.0
      %1059 = vmatpush1.msra.mxu0 0.0
      %1060 = vmatprep.subr.mxu0 0.0
      %1061 = vmatpush1.msra.mxu0 0.0
      %1062 = vmatprep.subr.mxu0 0.0
      %1063 = vmatpush1.msra.mxu0 0.0
      %1064 = vmatprep.subr.mxu0 0.0
      %1065 = vmatpush1.msra.mxu0 0.0
      %1066 = vmatprep.subr.mxu0 0.0
      %1067 = vmatpush1.msra.mxu0 0.0
      %1068 = vmatprep.subr.mxu0 0.0
      %1069 = vmatpush1.msra.mxu0 0.0
      %1070 = vmatprep.subr.mxu0 0.0
      %1071 = vmatpush1.msra.mxu0 0.0
      %1072 = vmatprep.subr.mxu0 0.0
      %1073 = vmatpush1.msra.mxu0 0.0
      %1074 = vmatprep.subr.mxu0 0.0
      %1075 = vmatpush1.msra.mxu0 0.0
      %1076 = vmatprep.subr.mxu0 0.0
      %1077 = vmatpush1.msra.mxu0 0.0
      %1078 = vmatprep.subr.mxu0 0.0
      %1079 = vmatpush1.msra.mxu0 0.0
      %1080 = vmatprep.subr.mxu0 0.0
      %1081 = vmatpush1.msra.mxu0 0.0
      %1082 = vmatprep.subr.mxu0 0.0
      %1083 = vmatpush1.msra.mxu0 0.0
      %1084 = vmatprep.subr.mxu0 0.0
      %1085 = vmatpush1.msra.mxu0 0.0
      %1086 = vmatprep.subr.mxu0 0.0
      %1087 = vmatpush1.msra.mxu0 0.0
      %1088 = vmatprep.subr.mxu0 0.0
      %1089 = vmatpush1.msra.mxu0 0.0
      %1090 = vmatprep.subr.mxu0 0.0
      %1091 = vmatpush1.msra.mxu0 0.0
      %1092 = vmatprep.subr.mxu0 0.0
      %1093 = vmatpush1.msra.mxu0 0.0
      %1094 = vmatprep.subr.mxu0 0.0
      %1095 = vmatpush1.msra.mxu0 0.0
      %1096 = vmatprep.subr.mxu0 0.0
      %1097 = vmatpush1.msra.mxu0 0.0
      %1098 = vmatprep.subr.mxu0 0.0
      %1099 = vmatpush1.msra.mxu0 0.0
      %1100 = vmatprep.subr.mxu0 0.0
      %1101 = vmatpush1.msra.mxu0 0.0
      %1102 = vmatprep.subr.mxu0 0.0
      %1103 = vmatpush1.msra.mxu0 0.0
      %1104 = vmatprep.mubr.f32.mxu0 0.0
      %1105 = vmatmul.mubr.f32.gmra.mrb[0].mxu0 %v961
      %v1106 = vpop.f32.mrb[0].mxu0
      %v1107 = vadd.f32 0.0, %v1106
      %v1108 = vpop.f32.mrb[0].mxu0
      %1109 = vdwg.mxu0
      %v1110 = vadd.f32 %v955, %v1036
      %v1111 = vadd.f32 %v956, %v1038
      %v1112 = vadd.f32 %v957, %v1107
      %s1113 = scalar_lea.vmem %s1, 20
      %v1114 = vld [vmem:[%s1113] sm:$0xf]
      %1115 = vrot.lane.b32.xlu0 %v283, 127
      %v1116 = vpop.permute.xlu0 %1115
      %1117 = vrot.lane.b32.xlu0 %v288, 127
      %v1118 = vpop.permute.xlu0 %1117
      %1119 = vrot.lane.b32.xlu0 %v293, 127
      %v1120 = vpop.permute.xlu0 %1119
      %vm1121 = vcmask 1039360
      %v1122 = vsel %vm1121, %v1116, %v1118
      %v1123 = vsel %vm1121, %v1118, %v1120
      %v1125 = vsel %vm315, %v1114, 0
      %v1127 = vsel %vm319, %v1122, 0
      %v1129 = vsel %vm319, %v1123, 0
      %v1131 = vsel %vm319, %v1120, 0
      %1133 = vmatprep.subr.mxu0 %v1129
      %1134 = vmatpush1.msra.mxu0 %v1127
      %1135 = vmatprep.subr.mxu0 0.0
      %1136 = vmatpush1.msra.mxu0 0.0
      %1137 = vmatprep.subr.mxu0 0.0
      %1138 = vmatpush1.msra.mxu0 0.0
      %1139 = vmatprep.subr.mxu0 0.0
      %1140 = vmatpush1.msra.mxu0 0.0
      %1141 = vmatprep.subr.mxu0 0.0
      %1142 = vmatpush1.msra.mxu0 0.0
      %1143 = vmatprep.subr.mxu0 0.0
      %1144 = vmatpush1.msra.mxu0 0.0
      %1145 = vmatprep.subr.mxu0 0.0
      %1146 = vmatpush1.msra.mxu0 0.0
      %1147 = vmatprep.subr.mxu0 0.0
      %1148 = vmatpush1.msra.mxu0 0.0
      %1149 = vmatprep.subr.mxu0 0.0
      %1150 = vmatpush1.msra.mxu0 0.0
      %1151 = vmatprep.subr.mxu0 0.0
      %1152 = vmatpush1.msra.mxu0 0.0
      %1153 = vmatprep.subr.mxu0 0.0
      %1154 = vmatpush1.msra.mxu0 0.0
      %1155 = vmatprep.subr.mxu0 0.0
      %1156 = vmatpush1.msra.mxu0 0.0
      %1157 = vmatprep.subr.mxu0 0.0
      %1158 = vmatpush1.msra.mxu0 0.0
      %1159 = vmatprep.subr.mxu0 0.0
      %1160 = vmatpush1.msra.mxu0 0.0
      %1161 = vmatprep.subr.mxu0 0.0
      %1162 = vmatpush1.msra.mxu0 0.0
      %1163 = vmatprep.subr.mxu0 0.0
      %1164 = vmatpush1.msra.mxu0 0.0
      %1165 = vmatprep.subr.mxu0 0.0
      %1166 = vmatpush1.msra.mxu0 0.0
      %1167 = vmatprep.subr.mxu0 0.0
      %1168 = vmatpush1.msra.mxu0 0.0
      %1169 = vmatprep.subr.mxu0 0.0
      %1170 = vmatpush1.msra.mxu0 0.0
      %1171 = vmatprep.subr.mxu0 0.0
      %1172 = vmatpush1.msra.mxu0 0.0
      %1173 = vmatprep.subr.mxu0 0.0
      %1174 = vmatpush1.msra.mxu0 0.0
      %1175 = vmatprep.subr.mxu0 0.0
      %1176 = vmatpush1.msra.mxu0 0.0
      %1177 = vmatprep.subr.mxu0 0.0
      %1178 = vmatpush1.msra.mxu0 0.0
      %1179 = vmatprep.subr.mxu0 0.0
      %1180 = vmatpush1.msra.mxu0 0.0
      %1181 = vmatprep.subr.mxu0 0.0
      %1182 = vmatpush1.msra.mxu0 0.0
      %1183 = vmatprep.subr.mxu0 0.0
      %1184 = vmatpush1.msra.mxu0 0.0
      %1185 = vmatprep.subr.mxu0 0.0
      %1186 = vmatpush1.msra.mxu0 0.0
      %1187 = vmatprep.subr.mxu0 0.0
      %1188 = vmatpush1.msra.mxu0 0.0
      %1189 = vmatprep.subr.mxu0 0.0
      %1190 = vmatpush1.msra.mxu0 0.0
      %1191 = vmatprep.subr.mxu0 0.0
      %1192 = vmatpush1.msra.mxu0 0.0
      %1193 = vmatprep.subr.mxu0 0.0
      %1194 = vmatpush1.msra.mxu0 0.0
      %1195 = vmatprep.subr.mxu0 0.0
      %1196 = vmatpush1.msra.mxu0 0.0
      %1197 = vmatprep.mubr.f32.mxu0 0.0
      %1198 = vmatmul.mubr.f32.gmra.mrb[0].mxu0 %v1125
      %v1199 = vpop.f32.mrb[0].mxu0
      %v1200 = vadd.f32 0.0, %v1199
      %v1201 = vpop.f32.mrb[0].mxu0
      %v1202 = vadd.f32 0.0, %v1201
      %1203 = vdwg.mxu0
      %1204 = vmatprep.subr.mxu0 0.0
      %1205 = vmatpush1.msra.mxu0 %v1131
      %1206 = vmatprep.subr.mxu0 0.0
      %1207 = vmatpush1.msra.mxu0 0.0
      %1208 = vmatprep.subr.mxu0 0.0
      %1209 = vmatpush1.msra.mxu0 0.0
      %1210 = vmatprep.subr.mxu0 0.0
      %1211 = vmatpush1.msra.mxu0 0.0
      %1212 = vmatprep.subr.mxu0 0.0
      %1213 = vmatpush1.msra.mxu0 0.0
      %1214 = vmatprep.subr.mxu0 0.0
      %1215 = vmatpush1.msra.mxu0 0.0
      %1216 = vmatprep.subr.mxu0 0.0
      %1217 = vmatpush1.msra.mxu0 0.0
      %1218 = vmatprep.subr.mxu0 0.0
      %1219 = vmatpush1.msra.mxu0 0.0
      %1220 = vmatprep.subr.mxu0 0.0
      %1221 = vmatpush1.msra.mxu0 0.0
      %1222 = vmatprep.subr.mxu0 0.0
      %1223 = vmatpush1.msra.mxu0 0.0
      %1224 = vmatprep.subr.mxu0 0.0
      %1225 = vmatpush1.msra.mxu0 0.0
      %1226 = vmatprep.subr.mxu0 0.0
      %1227 = vmatpush1.msra.mxu0 0.0
      %1228 = vmatprep.subr.mxu0 0.0
      %1229 = vmatpush1.msra.mxu0 0.0
      %1230 = vmatprep.subr.mxu0 0.0
      %1231 = vmatpush1.msra.mxu0 0.0
      %1232 = vmatprep.subr.mxu0 0.0
      %1233 = vmatpush1.msra.mxu0 0.0
      %1234 = vmatprep.subr.mxu0 0.0
      %1235 = vmatpush1.msra.mxu0 0.0
      %1236 = vmatprep.subr.mxu0 0.0
      %1237 = vmatpush1.msra.mxu0 0.0
      %1238 = vmatprep.subr.mxu0 0.0
      %1239 = vmatpush1.msra.mxu0 0.0
      %1240 = vmatprep.subr.mxu0 0.0
      %1241 = vmatpush1.msra.mxu0 0.0
      %1242 = vmatprep.subr.mxu0 0.0
      %1243 = vmatpush1.msra.mxu0 0.0
      %1244 = vmatprep.subr.mxu0 0.0
      %1245 = vmatpush1.msra.mxu0 0.0
      %1246 = vmatprep.subr.mxu0 0.0
      %1247 = vmatpush1.msra.mxu0 0.0
      %1248 = vmatprep.subr.mxu0 0.0
      %1249 = vmatpush1.msra.mxu0 0.0
      %1250 = vmatprep.subr.mxu0 0.0
      %1251 = vmatpush1.msra.mxu0 0.0
      %1252 = vmatprep.subr.mxu0 0.0
      %1253 = vmatpush1.msra.mxu0 0.0
      %1254 = vmatprep.subr.mxu0 0.0
      %1255 = vmatpush1.msra.mxu0 0.0
      %1256 = vmatprep.subr.mxu0 0.0
      %1257 = vmatpush1.msra.mxu0 0.0
      %1258 = vmatprep.subr.mxu0 0.0
      %1259 = vmatpush1.msra.mxu0 0.0
      %1260 = vmatprep.subr.mxu0 0.0
      %1261 = vmatpush1.msra.mxu0 0.0
      %1262 = vmatprep.subr.mxu0 0.0
      %1263 = vmatpush1.msra.mxu0 0.0
      %1264 = vmatprep.subr.mxu0 0.0
      %1265 = vmatpush1.msra.mxu0 0.0
      %1266 = vmatprep.subr.mxu0 0.0
      %1267 = vmatpush1.msra.mxu0 0.0
      %1268 = vmatprep.mubr.f32.mxu0 0.0
      %1269 = vmatmul.mubr.f32.gmra.mrb[0].mxu0 %v1125
      %v1270 = vpop.f32.mrb[0].mxu0
      %v1271 = vadd.f32 0.0, %v1270
      %v1272 = vpop.f32.mrb[0].mxu0
      %1273 = vdwg.mxu0
      %v1274 = vadd.f32 %v1110, %v1200
      %v1275 = vadd.f32 %v1111, %v1202
      %v1276 = vadd.f32 %v1112, %v1271
      %s1277 = scalar_lea.vmem %s1, 24
      %v1278 = vld [vmem:[%s1277] sm:$0xf]
      %1279 = vrot.lane.b32.xlu0 %v283, 111
      %v1280 = vpop.permute.xlu0 %1279
      %1281 = vrot.lane.b32.xlu0 %v288, 111
      %v1282 = vpop.permute.xlu0 %1281
      %1283 = vrot.lane.b32.xlu0 %v293, 111
      %v1284 = vpop.permute.xlu0 %1283
      %vm1285 = vcmask 908288
      %v1286 = vsel %vm1285, %v1280, %v1282
      %v1287 = vsel %vm1285, %v1282, %v1284
      %v1289 = vsel %vm315, %v1278, 0
      %v1291 = vsel %vm319, %v1286, 0
      %v1293 = vsel %vm319, %v1287, 0
      %v1295 = vsel %vm319, %v1284, 0
      %1297 = vmatprep.subr.mxu0 %v1293
      %1298 = vmatpush1.msra.mxu0 %v1291
      %1299 = vmatprep.subr.mxu0 0.0
      %1300 = vmatpush1.msra.mxu0 0.0
      %1301 = vmatprep.subr.mxu0 0.0
      %1302 = vmatpush1.msra.mxu0 0.0
      %1303 = vmatprep.subr.mxu0 0.0
      %1304 = vmatpush1.msra.mxu0 0.0
      %1305 = vmatprep.subr.mxu0 0.0
      %1306 = vmatpush1.msra.mxu0 0.0
      %1307 = vmatprep.subr.mxu0 0.0
      %1308 = vmatpush1.msra.mxu0 0.0
      %1309 = vmatprep.subr.mxu0 0.0
      %1310 = vmatpush1.msra.mxu0 0.0
      %1311 = vmatprep.subr.mxu0 0.0
      %1312 = vmatpush1.msra.mxu0 0.0
      %1313 = vmatprep.subr.mxu0 0.0
      %1314 = vmatpush1.msra.mxu0 0.0
      %1315 = vmatprep.subr.mxu0 0.0
      %1316 = vmatpush1.msra.mxu0 0.0
      %1317 = vmatprep.subr.mxu0 0.0
      %1318 = vmatpush1.msra.mxu0 0.0
      %1319 = vmatprep.subr.mxu0 0.0
      %1320 = vmatpush1.msra.mxu0 0.0
      %1321 = vmatprep.subr.mxu0 0.0
      %1322 = vmatpush1.msra.mxu0 0.0
      %1323 = vmatprep.subr.mxu0 0.0
      %1324 = vmatpush1.msra.mxu0 0.0
      %1325 = vmatprep.subr.mxu0 0.0
      %1326 = vmatpush1.msra.mxu0 0.0
      %1327 = vmatprep.subr.mxu0 0.0
      %1328 = vmatpush1.msra.mxu0 0.0
      %1329 = vmatprep.subr.mxu0 0.0
      %1330 = vmatpush1.msra.mxu0 0.0
      %1331 = vmatprep.subr.mxu0 0.0
      %1332 = vmatpush1.msra.mxu0 0.0
      %1333 = vmatprep.subr.mxu0 0.0
      %1334 = vmatpush1.msra.mxu0 0.0
      %1335 = vmatprep.subr.mxu0 0.0
      %1336 = vmatpush1.msra.mxu0 0.0
      %1337 = vmatprep.subr.mxu0 0.0
      %1338 = vmatpush1.msra.mxu0 0.0
      %1339 = vmatprep.subr.mxu0 0.0
      %1340 = vmatpush1.msra.mxu0 0.0
      %1341 = vmatprep.subr.mxu0 0.0
      %1342 = vmatpush1.msra.mxu0 0.0
      %1343 = vmatprep.subr.mxu0 0.0
      %1344 = vmatpush1.msra.mxu0 0.0
      %1345 = vmatprep.subr.mxu0 0.0
      %1346 = vmatpush1.msra.mxu0 0.0
      %1347 = vmatprep.subr.mxu0 0.0
      %1348 = vmatpush1.msra.mxu0 0.0
      %1349 = vmatprep.subr.mxu0 0.0
      %1350 = vmatpush1.msra.mxu0 0.0
      %1351 = vmatprep.subr.mxu0 0.0
      %1352 = vmatpush1.msra.mxu0 0.0
      %1353 = vmatprep.subr.mxu0 0.0
      %1354 = vmatpush1.msra.mxu0 0.0
      %1355 = vmatprep.subr.mxu0 0.0
      %1356 = vmatpush1.msra.mxu0 0.0
      %1357 = vmatprep.subr.mxu0 0.0
      %1358 = vmatpush1.msra.mxu0 0.0
      %1359 = vmatprep.subr.mxu0 0.0
      %1360 = vmatpush1.msra.mxu0 0.0
      %1361 = vmatprep.mubr.f32.mxu0 0.0
      %1362 = vmatmul.mubr.f32.gmra.mrb[0].mxu0 %v1289
      %v1363 = vpop.f32.mrb[0].mxu0
      %v1364 = vadd.f32 0.0, %v1363
      %v1365 = vpop.f32.mrb[0].mxu0
      %v1366 = vadd.f32 0.0, %v1365
      %1367 = vdwg.mxu0
      %1368 = vmatprep.subr.mxu0 0.0
      %1369 = vmatpush1.msra.mxu0 %v1295
      %1370 = vmatprep.subr.mxu0 0.0
      %1371 = vmatpush1.msra.mxu0 0.0
      %1372 = vmatprep.subr.mxu0 0.0
      %1373 = vmatpush1.msra.mxu0 0.0
      %1374 = vmatprep.subr.mxu0 0.0
      %1375 = vmatpush1.msra.mxu0 0.0
      %1376 = vmatprep.subr.mxu0 0.0
      %1377 = vmatpush1.msra.mxu0 0.0
      %1378 = vmatprep.subr.mxu0 0.0
      %1379 = vmatpush1.msra.mxu0 0.0
      %1380 = vmatprep.subr.mxu0 0.0
      %1381 = vmatpush1.msra.mxu0 0.0
      %1382 = vmatprep.subr.mxu0 0.0
      %1383 = vmatpush1.msra.mxu0 0.0
      %1384 = vmatprep.subr.mxu0 0.0
      %1385 = vmatpush1.msra.mxu0 0.0
      %1386 = vmatprep.subr.mxu0 0.0
      %1387 = vmatpush1.msra.mxu0 0.0
      %1388 = vmatprep.subr.mxu0 0.0
      %1389 = vmatpush1.msra.mxu0 0.0
      %1390 = vmatprep.subr.mxu0 0.0
      %1391 = vmatpush1.msra.mxu0 0.0
      %1392 = vmatprep.subr.mxu0 0.0
      %1393 = vmatpush1.msra.mxu0 0.0
      %1394 = vmatprep.subr.mxu0 0.0
      %1395 = vmatpush1.msra.mxu0 0.0
      %1396 = vmatprep.subr.mxu0 0.0
      %1397 = vmatpush1.msra.mxu0 0.0
      %1398 = vmatprep.subr.mxu0 0.0
      %1399 = vmatpush1.msra.mxu0 0.0
      %1400 = vmatprep.subr.mxu0 0.0
      %1401 = vmatpush1.msra.mxu0 0.0
      %1402 = vmatprep.subr.mxu0 0.0
      %1403 = vmatpush1.msra.mxu0 0.0
      %1404 = vmatprep.subr.mxu0 0.0
      %1405 = vmatpush1.msra.mxu0 0.0
      %1406 = vmatprep.subr.mxu0 0.0
      %1407 = vmatpush1.msra.mxu0 0.0
      %1408 = vmatprep.subr.mxu0 0.0
      %1409 = vmatpush1.msra.mxu0 0.0
      %1410 = vmatprep.subr.mxu0 0.0
      %1411 = vmatpush1.msra.mxu0 0.0
      %1412 = vmatprep.subr.mxu0 0.0
      %1413 = vmatpush1.msra.mxu0 0.0
      %1414 = vmatprep.subr.mxu0 0.0
      %1415 = vmatpush1.msra.mxu0 0.0
      %1416 = vmatprep.subr.mxu0 0.0
      %1417 = vmatpush1.msra.mxu0 0.0
      %1418 = vmatprep.subr.mxu0 0.0
      %1419 = vmatpush1.msra.mxu0 0.0
      %1420 = vmatprep.subr.mxu0 0.0
      %1421 = vmatpush1.msra.mxu0 0.0
      %1422 = vmatprep.subr.mxu0 0.0
      %1423 = vmatpush1.msra.mxu0 0.0
      %1424 = vmatprep.subr.mxu0 0.0
      %1425 = vmatpush1.msra.mxu0 0.0
      %1426 = vmatprep.subr.mxu0 0.0
      %1427 = vmatpush1.msra.mxu0 0.0
      %1428 = vmatprep.subr.mxu0 0.0
      %1429 = vmatpush1.msra.mxu0 0.0
      %1430 = vmatprep.subr.mxu0 0.0
      %1431 = vmatpush1.msra.mxu0 0.0
      %1432 = vmatprep.mubr.f32.mxu0 0.0
      %1433 = vmatmul.mubr.f32.gmra.mrb[0].mxu0 %v1289
      %v1434 = vpop.f32.mrb[0].mxu0
      %v1435 = vadd.f32 0.0, %v1434
      %v1436 = vpop.f32.mrb[0].mxu0
      %1437 = vdwg.mxu0
      %v1438 = vadd.f32 %v1274, %v1364
      %v1439 = vadd.f32 %v1275, %v1366
      %v1440 = vadd.f32 %v1276, %v1435
      %s1441 = scalar_lea.vmem %s1, 28
      %v1442 = vld [vmem:[%s1441] sm:$0xf]
      %1443 = vrot.lane.b32.xlu0 %v283, 110
      %v1444 = vpop.permute.xlu0 %1443
      %1445 = vrot.lane.b32.xlu0 %v288, 110
      %v1446 = vpop.permute.xlu0 %1445
      %1447 = vrot.lane.b32.xlu0 %v293, 110
      %v1448 = vpop.permute.xlu0 %1447
      %vm1449 = vcmask 900096
      %v1450 = vsel %vm1449, %v1444, %v1446
      %v1451 = vsel %vm1449, %v1446, %v1448
      %v1453 = vsel %vm315, %v1442, 0
      %v1455 = vsel %vm319, %v1450, 0
      %v1457 = vsel %vm319, %v1451, 0
      %v1459 = vsel %vm319, %v1448, 0
      %1461 = vmatprep.subr.mxu0 %v1457
      %1462 = vmatpush1.msra.mxu0 %v1455
      %1463 = vmatprep.subr.mxu0 0.0
      %1464 = vmatpush1.msra.mxu0 0.0
      %1465 = vmatprep.subr.mxu0 0.0
      %1466 = vmatpush1.msra.mxu0 0.0
      %1467 = vmatprep.subr.mxu0 0.0
      %1468 = vmatpush1.msra.mxu0 0.0
      %1469 = vmatprep.subr.mxu0 0.0
      %1470 = vmatpush1.msra.mxu0 0.0
      %1471 = vmatprep.subr.mxu0 0.0
      %1472 = vmatpush1.msra.mxu0 0.0
      %1473 = vmatprep.subr.mxu0 0.0
      %1474 = vmatpush1.msra.mxu0 0.0
      %1475 = vmatprep.subr.mxu0 0.0
      %1476 = vmatpush1.msra.mxu0 0.0
      %1477 = vmatprep.subr.mxu0 0.0
      %1478 = vmatpush1.msra.mxu0 0.0
      %1479 = vmatprep.subr.mxu0 0.0
      %1480 = vmatpush1.msra.mxu0 0.0
      %1481 = vmatprep.subr.mxu0 0.0
      %1482 = vmatpush1.msra.mxu0 0.0
      %1483 = vmatprep.subr.mxu0 0.0
      %1484 = vmatpush1.msra.mxu0 0.0
      %1485 = vmatprep.subr.mxu0 0.0
      %1486 = vmatpush1.msra.mxu0 0.0
      %1487 = vmatprep.subr.mxu0 0.0
      %1488 = vmatpush1.msra.mxu0 0.0
      %1489 = vmatprep.subr.mxu0 0.0
      %1490 = vmatpush1.msra.mxu0 0.0
      %1491 = vmatprep.subr.mxu0 0.0
      %1492 = vmatpush1.msra.mxu0 0.0
      %1493 = vmatprep.subr.mxu0 0.0
      %1494 = vmatpush1.msra.mxu0 0.0
      %1495 = vmatprep.subr.mxu0 0.0
      %1496 = vmatpush1.msra.mxu0 0.0
      %1497 = vmatprep.subr.mxu0 0.0
      %1498 = vmatpush1.msra.mxu0 0.0
      %1499 = vmatprep.subr.mxu0 0.0
      %1500 = vmatpush1.msra.mxu0 0.0
      %1501 = vmatprep.subr.mxu0 0.0
      %1502 = vmatpush1.msra.mxu0 0.0
      %1503 = vmatprep.subr.mxu0 0.0
      %1504 = vmatpush1.msra.mxu0 0.0
      %1505 = vmatprep.subr.mxu0 0.0
      %1506 = vmatpush1.msra.mxu0 0.0
      %1507 = vmatprep.subr.mxu0 0.0
      %1508 = vmatpush1.msra.mxu0 0.0
      %1509 = vmatprep.subr.mxu0 0.0
      %1510 = vmatpush1.msra.mxu0 0.0
      %1511 = vmatprep.subr.mxu0 0.0
      %1512 = vmatpush1.msra.mxu0 0.0
      %1513 = vmatprep.subr.mxu0 0.0
      %1514 = vmatpush1.msra.mxu0 0.0
      %1515 = vmatprep.subr.mxu0 0.0
      %1516 = vmatpush1.msra.mxu0 0.0
      %1517 = vmatprep.subr.mxu0 0.0
      %1518 = vmatpush1.msra.mxu0 0.0
      %1519 = vmatprep.subr.mxu0 0.0
      %1520 = vmatpush1.msra.mxu0 0.0
      %1521 = vmatprep.subr.mxu0 0.0
      %1522 = vmatpush1.msra.mxu0 0.0
      %1523 = vmatprep.subr.mxu0 0.0
      %1524 = vmatpush1.msra.mxu0 0.0
      %1525 = vmatprep.mubr.f32.mxu0 0.0
      %1526 = vmatmul.mubr.f32.gmra.mrb[0].mxu0 %v1453
      %v1527 = vpop.f32.mrb[0].mxu0
      %v1528 = vadd.f32 0.0, %v1527
      %v1529 = vpop.f32.mrb[0].mxu0
      %v1530 = vadd.f32 0.0, %v1529
      %1531 = vdwg.mxu0
      %1532 = vmatprep.subr.mxu0 0.0
      %1533 = vmatpush1.msra.mxu0 %v1459
      %1534 = vmatprep.subr.mxu0 0.0
      %1535 = vmatpush1.msra.mxu0 0.0
      %1536 = vmatprep.subr.mxu0 0.0
      %1537 = vmatpush1.msra.mxu0 0.0
      %1538 = vmatprep.subr.mxu0 0.0
      %1539 = vmatpush1.msra.mxu0 0.0
      %1540 = vmatprep.subr.mxu0 0.0
      %1541 = vmatpush1.msra.mxu0 0.0
      %1542 = vmatprep.subr.mxu0 0.0
      %1543 = vmatpush1.msra.mxu0 0.0
      %1544 = vmatprep.subr.mxu0 0.0
      %1545 = vmatpush1.msra.mxu0 0.0
      %1546 = vmatprep.subr.mxu0 0.0
      %1547 = vmatpush1.msra.mxu0 0.0
      %1548 = vmatprep.subr.mxu0 0.0
      %1549 = vmatpush1.msra.mxu0 0.0
      %1550 = vmatprep.subr.mxu0 0.0
      %1551 = vmatpush1.msra.mxu0 0.0
      %1552 = vmatprep.subr.mxu0 0.0
      %1553 = vmatpush1.msra.mxu0 0.0
      %1554 = vmatprep.subr.mxu0 0.0
      %1555 = vmatpush1.msra.mxu0 0.0
      %1556 = vmatprep.subr.mxu0 0.0
      %1557 = vmatpush1.msra.mxu0 0.0
      %1558 = vmatprep.subr.mxu0 0.0
      %1559 = vmatpush1.msra.mxu0 0.0
      %1560 = vmatprep.subr.mxu0 0.0
      %1561 = vmatpush1.msra.mxu0 0.0
      %1562 = vmatprep.subr.mxu0 0.0
      %1563 = vmatpush1.msra.mxu0 0.0
      %1564 = vmatprep.subr.mxu0 0.0
      %1565 = vmatpush1.msra.mxu0 0.0
      %1566 = vmatprep.subr.mxu0 0.0
      %1567 = vmatpush1.msra.mxu0 0.0
      %1568 = vmatprep.subr.mxu0 0.0
      %1569 = vmatpush1.msra.mxu0 0.0
      %1570 = vmatprep.subr.mxu0 0.0
      %1571 = vmatpush1.msra.mxu0 0.0
      %1572 = vmatprep.subr.mxu0 0.0
      %1573 = vmatpush1.msra.mxu0 0.0
      %1574 = vmatprep.subr.mxu0 0.0
      %1575 = vmatpush1.msra.mxu0 0.0
      %1576 = vmatprep.subr.mxu0 0.0
      %1577 = vmatpush1.msra.mxu0 0.0
      %1578 = vmatprep.subr.mxu0 0.0
      %1579 = vmatpush1.msra.mxu0 0.0
      %1580 = vmatprep.subr.mxu0 0.0
      %1581 = vmatpush1.msra.mxu0 0.0
      %1582 = vmatprep.subr.mxu0 0.0
      %1583 = vmatpush1.msra.mxu0 0.0
      %1584 = vmatprep.subr.mxu0 0.0
      %1585 = vmatpush1.msra.mxu0 0.0
      %1586 = vmatprep.subr.mxu0 0.0
      %1587 = vmatpush1.msra.mxu0 0.0
      %1588 = vmatprep.subr.mxu0 0.0
      %1589 = vmatpush1.msra.mxu0 0.0
      %1590 = vmatprep.subr.mxu0 0.0
      %1591 = vmatpush1.msra.mxu0 0.0
      %1592 = vmatprep.subr.mxu0 0.0
      %1593 = vmatpush1.msra.mxu0 0.0
      %1594 = vmatprep.subr.mxu0 0.0
      %1595 = vmatpush1.msra.mxu0 0.0
      %1596 = vmatprep.mubr.f32.mxu0 0.0
      %1597 = vmatmul.mubr.f32.gmra.mrb[0].mxu0 %v1453
      %v1598 = vpop.f32.mrb[0].mxu0
      %v1599 = vadd.f32 0.0, %v1598
      %v1600 = vpop.f32.mrb[0].mxu0
      %1601 = vdwg.mxu0
      %v1602 = vadd.f32 %v1438, %v1528
      %v1603 = vadd.f32 %v1439, %v1530
      %v1604 = vadd.f32 %v1440, %v1599
      %s1605 = scalar_lea.vmem %s1, 32
      %v1606 = vld [vmem:[%s1605] sm:$0xf]
      %1607 = vrot.lane.b32.xlu0 %v283, 109
      %v1608 = vpop.permute.xlu0 %1607
      %1609 = vrot.lane.b32.xlu0 %v288, 109
      %v1610 = vpop.permute.xlu0 %1609
      %1611 = vrot.lane.b32.xlu0 %v293, 109
      %v1612 = vpop.permute.xlu0 %1611
      %vm1613 = vcmask 891904
      %v1614 = vsel %vm1613, %v1608, %v1610
      %v1615 = vsel %vm1613, %v1610, %v1612
      %v1617 = vsel %vm315, %v1606, 0
      %v1619 = vsel %vm319, %v1614, 0
      %v1621 = vsel %vm319, %v1615, 0
      %v1623 = vsel %vm319, %v1612, 0
      %1625 = vmatprep.subr.mxu0 %v1621
      %1626 = vmatpush1.msra.mxu0 %v1619
      %1627 = vmatprep.subr.mxu0 0.0
      %1628 = vmatpush1.msra.mxu0 0.0
      %1629 = vmatprep.subr.mxu0 0.0
      %1630 = vmatpush1.msra.mxu0 0.0
      %1631 = vmatprep.subr.mxu0 0.0
      %1632 = vmatpush1.msra.mxu0 0.0
      %1633 = vmatprep.subr.mxu0 0.0
      %1634 = vmatpush1.msra.mxu0 0.0
      %1635 = vmatprep.subr.mxu0 0.0
      %1636 = vmatpush1.msra.mxu0 0.0
      %1637 = vmatprep.subr.mxu0 0.0
      %1638 = vmatpush1.msra.mxu0 0.0
      %1639 = vmatprep.subr.mxu0 0.0
      %1640 = vmatpush1.msra.mxu0 0.0
      %1641 = vmatprep.subr.mxu0 0.0
      %1642 = vmatpush1.msra.mxu0 0.0
      %1643 = vmatprep.subr.mxu0 0.0
      %1644 = vmatpush1.msra.mxu0 0.0
      %1645 = vmatprep.subr.mxu0 0.0
      %1646 = vmatpush1.msra.mxu0 0.0
      %1647 = vmatprep.subr.mxu0 0.0
      %1648 = vmatpush1.msra.mxu0 0.0
      %1649 = vmatprep.subr.mxu0 0.0
      %1650 = vmatpush1.msra.mxu0 0.0
      %1651 = vmatprep.subr.mxu0 0.0
      %1652 = vmatpush1.msra.mxu0 0.0
      %1653 = vmatprep.subr.mxu0 0.0
      %1654 = vmatpush1.msra.mxu0 0.0
      %1655 = vmatprep.subr.mxu0 0.0
      %1656 = vmatpush1.msra.mxu0 0.0
      %1657 = vmatprep.subr.mxu0 0.0
      %1658 = vmatpush1.msra.mxu0 0.0
      %1659 = vmatprep.subr.mxu0 0.0
      %1660 = vmatpush1.msra.mxu0 0.0
      %1661 = vmatprep.subr.mxu0 0.0
      %1662 = vmatpush1.msra.mxu0 0.0
      %1663 = vmatprep.subr.mxu0 0.0
      %1664 = vmatpush1.msra.mxu0 0.0
      %1665 = vmatprep.subr.mxu0 0.0
      %1666 = vmatpush1.msra.mxu0 0.0
      %1667 = vmatprep.subr.mxu0 0.0
      %1668 = vmatpush1.msra.mxu0 0.0
      %1669 = vmatprep.subr.mxu0 0.0
      %1670 = vmatpush1.msra.mxu0 0.0
      %1671 = vmatprep.subr.mxu0 0.0
      %1672 = vmatpush1.msra.mxu0 0.0
      %1673 = vmatprep.subr.mxu0 0.0
      %1674 = vmatpush1.msra.mxu0 0.0
      %1675 = vmatprep.subr.mxu0 0.0
      %1676 = vmatpush1.msra.mxu0 0.0
      %1677 = vmatprep.subr.mxu0 0.0
      %1678 = vmatpush1.msra.mxu0 0.0
      %1679 = vmatprep.subr.mxu0 0.0
      %1680 = vmatpush1.msra.mxu0 0.0
      %1681 = vmatprep.subr.mxu0 0.0
      %1682 = vmatpush1.msra.mxu0 0.0
      %1683 = vmatprep.subr.mxu0 0.0
      %1684 = vmatpush1.msra.mxu0 0.0
      %1685 = vmatprep.subr.mxu0 0.0
      %1686 = vmatpush1.msra.mxu0 0.0
      %1687 = vmatprep.subr.mxu0 0.0
      %1688 = vmatpush1.msra.mxu0 0.0
      %1689 = vmatprep.mubr.f32.mxu0 0.0
      %1690 = vmatmul.mubr.f32.gmra.mrb[0].mxu0 %v1617
      %v1691 = vpop.f32.mrb[0].mxu0
      %v1692 = vadd.f32 0.0, %v1691
      %v1693 = vpop.f32.mrb[0].mxu0
      %v1694 = vadd.f32 0.0, %v1693
      %1695 = vdwg.mxu0
      %1696 = vmatprep.subr.mxu0 0.0
      %1697 = vmatpush1.msra.mxu0 %v1623
      %1698 = vmatprep.subr.mxu0 0.0
      %1699 = vmatpush1.msra.mxu0 0.0
      %1700 = vmatprep.subr.mxu0 0.0
      %1701 = vmatpush1.msra.mxu0 0.0
      %1702 = vmatprep.subr.mxu0 0.0
      %1703 = vmatpush1.msra.mxu0 0.0
      %1704 = vmatprep.subr.mxu0 0.0
      %1705 = vmatpush1.msra.mxu0 0.0
      %1706 = vmatprep.subr.mxu0 0.0
      %1707 = vmatpush1.msra.mxu0 0.0
      %1708 = vmatprep.subr.mxu0 0.0
      %1709 = vmatpush1.msra.mxu0 0.0
      %1710 = vmatprep.subr.mxu0 0.0
      %1711 = vmatpush1.msra.mxu0 0.0
      %1712 = vmatprep.subr.mxu0 0.0
      %1713 = vmatpush1.msra.mxu0 0.0
      %1714 = vmatprep.subr.mxu0 0.0
      %1715 = vmatpush1.msra.mxu0 0.0
      %1716 = vmatprep.subr.mxu0 0.0
      %1717 = vmatpush1.msra.mxu0 0.0
      %1718 = vmatprep.subr.mxu0 0.0
      %1719 = vmatpush1.msra.mxu0 0.0
      %1720 = vmatprep.subr.mxu0 0.0
      %1721 = vmatpush1.msra.mxu0 0.0
      %1722 = vmatprep.subr.mxu0 0.0
      %1723 = vmatpush1.msra.mxu0 0.0
      %1724 = vmatprep.subr.mxu0 0.0
      %1725 = vmatpush1.msra.mxu0 0.0
      %1726 = vmatprep.subr.mxu0 0.0
      %1727 = vmatpush1.msra.mxu0 0.0
      %1728 = vmatprep.subr.mxu0 0.0
      %1729 = vmatpush1.msra.mxu0 0.0
      %1730 = vmatprep.subr.mxu0 0.0
      %1731 = vmatpush1.msra.mxu0 0.0
      %1732 = vmatprep.subr.mxu0 0.0
      %1733 = vmatpush1.msra.mxu0 0.0
      %1734 = vmatprep.subr.mxu0 0.0
      %1735 = vmatpush1.msra.mxu0 0.0
      %1736 = vmatprep.subr.mxu0 0.0
      %1737 = vmatpush1.msra.mxu0 0.0
      %1738 = vmatprep.subr.mxu0 0.0
      %1739 = vmatpush1.msra.mxu0 0.0
      %1740 = vmatprep.subr.mxu0 0.0
      %1741 = vmatpush1.msra.mxu0 0.0
      %1742 = vmatprep.subr.mxu0 0.0
      %1743 = vmatpush1.msra.mxu0 0.0
      %1744 = vmatprep.subr.mxu0 0.0
      %1745 = vmatpush1.msra.mxu0 0.0
      %1746 = vmatprep.subr.mxu0 0.0
      %1747 = vmatpush1.msra.mxu0 0.0
      %1748 = vmatprep.subr.mxu0 0.0
      %1749 = vmatpush1.msra.mxu0 0.0
      %1750 = vmatprep.subr.mxu0 0.0
      %1751 = vmatpush1.msra.mxu0 0.0
      %1752 = vmatprep.subr.mxu0 0.0
      %1753 = vmatpush1.msra.mxu0 0.0
      %1754 = vmatprep.subr.mxu0 0.0
      %1755 = vmatpush1.msra.mxu0 0.0
      %1756 = vmatprep.subr.mxu0 0.0
      %1757 = vmatpush1.msra.mxu0 0.0
      %1758 = vmatprep.subr.mxu0 0.0
      %1759 = vmatpush1.msra.mxu0 0.0
      %1760 = vmatprep.mubr.f32.mxu0 0.0
      %1761 = vmatmul.mubr.f32.gmra.mrb[0].mxu0 %v1617
      %v1762 = vpop.f32.mrb[0].mxu0
      %v1763 = vadd.f32 0.0, %v1762
      %v1764 = vpop.f32.mrb[0].mxu0
      %1765 = vdwg.mxu0
      %v1766 = vadd.f32 %v1602, %v1692
      %v1767 = vadd.f32 %v1603, %v1694
      %v1768 = vadd.f32 %v1604, %v1763
      %v1769 = vld [vmem:[%s2] sm:$0xf]
      %1771 = vset.pattern.permute.xlu0 0
      %1772 = vperm.xlu0 %1771, %v1769
      %v1773 = vpop.permute.xlu0 %1772
      %v1775 = vadd.f32 %v1766, %v1773
      %v1776 = vadd.f32 %v1767, %v1773
      %v1777 = vadd.f32 %v1768, %v1773
      %v1778 = vmax.f32 %v1775, 0.0
      %v1779 = vmax.f32 %v1776, 0.0
      %v1780 = vmax.f32 %v1777, 0.0
      %v1782 = vlaneseq
      %v1783 = vshrl.u32 %v1782, 7
      %v1784 = vsub.s32 0, %v1783
      %v1785 = vrot.slane %v285, %v1784
      %v1786 = vlaneseq
      %v1787 = vshrl.u32 %v1786, 7
      %v1788 = vsub.s32 1, %v1787
      %v1789 = vrot.slane %v285, %v1788
      %v1790 = vlaneseq
      %v1791 = vshrl.u32 %v1790, 7
      %v1792 = vsub.s32 2, %v1791
      %v1793 = vrot.slane %v285, %v1792
      %v1797 = vmul.f32 %v1778, %v1785
      %v1798 = vmul.f32 %v1779, %v1789
      %v1799 = vmul.f32 %v1780, %v1793
      %v1803 = vcombine.low %v1797, %v1798
      %1805 = vst [vmem:[#allocation2] sm:$0xff] %v1803
      %vm1806 = vcmask 551936
      %1807 = vst.msk [vmem:[#allocation2 + $0x8] sm:$0xf] %vm1806, %v1799
      %v1808 = vld [vmem:[%s3] sm:$0xff]
      %v1809 = vld [vmem:[%s3 + $0x8] sm:$0xff]
      %v1810 = vld [vmem:[%s3 + $0x10] sm:$0x3]
      %v1811 = vld [vmem:[%s4] sm:$0xff]
      %v1812 = vld [vmem:[%s4 + $0x8] sm:$0xff]
      %v1813 = vld [vmem:[%s4 + $0x10] sm:$0x3]
      %1815 = vset.pattern.permute.xlu0 0
      %1816 = vperm.xlu0 %1815, %v1811
      %v1817 = vpop.permute.xlu0 %1816
      %1820 = vset.pattern.permute.xlu0 0
      %1821 = vperm.xlu0 %1820, %v1812
      %v1822 = vpop.permute.xlu0 %1821
      %1825 = vset.pattern.permute.xlu0 0
      %1826 = vperm.xlu0 %1825, %v1813
      %v1827 = vpop.permute.xlu0 %1826
      %v1830 = vsel %vm315, %v1808, 0
      %v1833 = vsel %vm315, %v1809, 0
      %v1836 = vsel %vm315, %v1810, 0
      %v1838 = vsel %vm319, %v1797, 0
      %v1840 = vsel %vm319, %v1798, 0
      %v1842 = vsel %vm319, %v1799, 0
      %1844 = vmatprep.subr.mxu0 %v1840
      %1845 = vmatpush1.msra.mxu0 %v1838
      %1846 = vmatprep.subr.mxu0 0.0
      %1847 = vmatpush1.msra.mxu0 0.0
      %1848 = vmatprep.subr.mxu0 0.0
      %1849 = vmatpush1.msra.mxu0 0.0
      %1850 = vmatprep.subr.mxu0 0.0
      %1851 = vmatpush1.msra.mxu0 0.0
      %1852 = vmatprep.subr.mxu0 0.0
      %1853 = vmatpush1.msra.mxu0 0.0
      %1854 = vmatprep.subr.mxu0 0.0
      %1855 = vmatpush1.msra.mxu0 0.0
      %1856 = vmatprep.subr.mxu0 0.0
      %1857 = vmatpush1.msra.mxu0 0.0
      %1858 = vmatprep.subr.mxu0 0.0
      %1859 = vmatpush1.msra.mxu0 0.0
      %1860 = vmatprep.subr.mxu0 0.0
      %1861 = vmatpush1.msra.mxu0 0.0
      %1862 = vmatprep.subr.mxu0 0.0
      %1863 = vmatpush1.msra.mxu0 0.0
      %1864 = vmatprep.subr.mxu0 0.0
      %1865 = vmatpush1.msra.mxu0 0.0
      %1866 = vmatprep.subr.mxu0 0.0
      %1867 = vmatpush1.msra.mxu0 0.0
      %1868 = vmatprep.subr.mxu0 0.0
      %1869 = vmatpush1.msra.mxu0 0.0
      %1870 = vmatprep.subr.mxu0 0.0
      %1871 = vmatpush1.msra.mxu0 0.0
      %1872 = vmatprep.subr.mxu0 0.0
      %1873 = vmatpush1.msra.mxu0 0.0
      %1874 = vmatprep.subr.mxu0 0.0
      %1875 = vmatpush1.msra.mxu0 0.0
      %1876 = vmatprep.subr.mxu0 0.0
      %1877 = vmatpush1.msra.mxu0 0.0
      %1878 = vmatprep.subr.mxu0 0.0
      %1879 = vmatpush1.msra.mxu0 0.0
      %1880 = vmatprep.subr.mxu0 0.0
      %1881 = vmatpush1.msra.mxu0 0.0
      %1882 = vmatprep.subr.mxu0 0.0
      %1883 = vmatpush1.msra.mxu0 0.0
      %1884 = vmatprep.subr.mxu0 0.0
      %1885 = vmatpush1.msra.mxu0 0.0
      %1886 = vmatprep.subr.mxu0 0.0
      %1887 = vmatpush1.msra.mxu0 0.0
      %1888 = vmatprep.subr.mxu0 0.0
      %1889 = vmatpush1.msra.mxu0 0.0
      %1890 = vmatprep.subr.mxu0 0.0
      %1891 = vmatpush1.msra.mxu0 0.0
      %1892 = vmatprep.subr.mxu0 0.0
      %1893 = vmatpush1.msra.mxu0 0.0
      %1894 = vmatprep.subr.mxu0 0.0
      %1895 = vmatpush1.msra.mxu0 0.0
      %1896 = vmatprep.subr.mxu0 0.0
      %1897 = vmatpush1.msra.mxu0 0.0
      %1898 = vmatprep.subr.mxu0 0.0
      %1899 = vmatpush1.msra.mxu0 0.0
      %1900 = vmatprep.subr.mxu0 0.0
      %1901 = vmatpush1.msra.mxu0 0.0
      %1902 = vmatprep.subr.mxu0 0.0
      %1903 = vmatpush1.msra.mxu0 0.0
      %1904 = vmatprep.subr.mxu0 0.0
      %1905 = vmatpush1.msra.mxu0 0.0
      %1906 = vmatprep.subr.mxu0 0.0
      %1907 = vmatpush1.msra.mxu0 0.0
      %1908 = vmatprep.mubr.f32.mxu0 0.0
      %1909 = vmatmul.mubr.f32.gmra.mrb[0].mxu0 %v1830
      %v1910 = vpop.f32.mrb[0].mxu0
      %v1911 = vadd.f32 %v1817, %v1910
      %v1912 = vpop.f32.mrb[0].mxu0
      %v1913 = vadd.f32 %v1817, %v1912
      %1914 = vmatprep.mubr.f32.mxu0 0.0
      %1915 = vmatmul.mubr.f32.gmra.mrb[0].mxu0 %v1833
      %v1916 = vpop.f32.mrb[0].mxu0
      %v1917 = vadd.f32 %v1822, %v1916
      %v1918 = vpop.f32.mrb[0].mxu0
      %v1919 = vadd.f32 %v1822, %v1918
      %1920 = vmatprep.mubr.f32.mxu0 0.0
      %1921 = vmatmul.mubr.f32.gmra.mrb[0].mxu0 %v1836
      %v1922 = vpop.f32.mrb[0].mxu0
      %v1923 = vadd.f32 %v1827, %v1922
      %v1924 = vpop.f32.mrb[0].mxu0
      %v1925 = vadd.f32 %v1827, %v1924
      %1926 = vdwg.mxu0
      %1927 = vmatprep.subr.mxu0 0.0
      %1928 = vmatpush1.msra.mxu0 %v1842
      %1929 = vmatprep.subr.mxu0 0.0
      %1930 = vmatpush1.msra.mxu0 0.0
      %1931 = vmatprep.subr.mxu0 0.0
      %1932 = vmatpush1.msra.mxu0 0.0
      %1933 = vmatprep.subr.mxu0 0.0
      %1934 = vmatpush1.msra.mxu0 0.0
      %1935 = vmatprep.subr.mxu0 0.0
      %1936 = vmatpush1.msra.mxu0 0.0
      %1937 = vmatprep.subr.mxu0 0.0
      %1938 = vmatpush1.msra.mxu0 0.0
      %1939 = vmatprep.subr.mxu0 0.0
      %1940 = vmatpush1.msra.mxu0 0.0
      %1941 = vmatprep.subr.mxu0 0.0
      %1942 = vmatpush1.msra.mxu0 0.0
      %1943 = vmatprep.subr.mxu0 0.0
      %1944 = vmatpush1.msra.mxu0 0.0
      %1945 = vmatprep.subr.mxu0 0.0
      %1946 = vmatpush1.msra.mxu0 0.0
      %1947 = vmatprep.subr.mxu0 0.0
      %1948 = vmatpush1.msra.mxu0 0.0
      %1949 = vmatprep.subr.mxu0 0.0
      %1950 = vmatpush1.msra.mxu0 0.0
      %1951 = vmatprep.subr.mxu0 0.0
      %1952 = vmatpush1.msra.mxu0 0.0
      %1953 = vmatprep.subr.mxu0 0.0
      %1954 = vmatpush1.msra.mxu0 0.0
      %1955 = vmatprep.subr.mxu0 0.0
      %1956 = vmatpush1.msra.mxu0 0.0
      %1957 = vmatprep.subr.mxu0 0.0
      %1958 = vmatpush1.msra.mxu0 0.0
      %1959 = vmatprep.subr.mxu0 0.0
      %1960 = vmatpush1.msra.mxu0 0.0
      %1961 = vmatprep.subr.mxu0 0.0
      %1962 = vmatpush1.msra.mxu0 0.0
      %1963 = vmatprep.subr.mxu0 0.0
      %1964 = vmatpush1.msra.mxu0 0.0
      %1965 = vmatprep.subr.mxu0 0.0
      %1966 = vmatpush1.msra.mxu0 0.0
      %1967 = vmatprep.subr.mxu0 0.0
      %1968 = vmatpush1.msra.mxu0 0.0
      %1969 = vmatprep.subr.mxu0 0.0
      %1970 = vmatpush1.msra.mxu0 0.0
      %1971 = vmatprep.subr.mxu0 0.0
      %1972 = vmatpush1.msra.mxu0 0.0
      %1973 = vmatprep.subr.mxu0 0.0
      %1974 = vmatpush1.msra.mxu0 0.0
      %1975 = vmatprep.subr.mxu0 0.0
      %1976 = vmatpush1.msra.mxu0 0.0
      %1977 = vmatprep.subr.mxu0 0.0
      %1978 = vmatpush1.msra.mxu0 0.0
      %1979 = vmatprep.subr.mxu0 0.0
      %1980 = vmatpush1.msra.mxu0 0.0
      %1981 = vmatprep.subr.mxu0 0.0
      %1982 = vmatpush1.msra.mxu0 0.0
      %1983 = vmatprep.subr.mxu0 0.0
      %1984 = vmatpush1.msra.mxu0 0.0
      %1985 = vmatprep.subr.mxu0 0.0
      %1986 = vmatpush1.msra.mxu0 0.0
      %1987 = vmatprep.subr.mxu0 0.0
      %1988 = vmatpush1.msra.mxu0 0.0
      %1989 = vmatprep.subr.mxu0 0.0
      %1990 = vmatpush1.msra.mxu0 0.0
      %1991 = vmatprep.mubr.f32.mxu0 0.0
      %1992 = vmatmul.mubr.f32.gmra.mrb[0].mxu0 %v1830
      %v1993 = vpop.f32.mrb[0].mxu0
      %v1994 = vadd.f32 %v1817, %v1993
      %v1995 = vpop.f32.mrb[0].mxu0
      %1996 = vmatprep.mubr.f32.mxu0 0.0
      %1997 = vmatmul.mubr.f32.gmra.mrb[0].mxu0 %v1833
      %v1998 = vpop.f32.mrb[0].mxu0
      %v1999 = vadd.f32 %v1822, %v1998
      %v2000 = vpop.f32.mrb[0].mxu0
      %2001 = vmatprep.mubr.f32.mxu0 0.0
      %2002 = vmatmul.mubr.f32.gmra.mrb[0].mxu0 %v1836
      %v2003 = vpop.f32.mrb[0].mxu0
      %v2004 = vadd.f32 %v1827, %v2003
      %v2005 = vpop.f32.mrb[0].mxu0
      %2006 = vdwg.mxu0
      %2007 = vst [vmem:[%s273] sm:$0xff] %v1911
      %2008 = vst [vmem:[%s273 + $0x8] sm:$0xff] %v1913
      %vm2009 = vcmask 556032
      %2010 = vst.msk [vmem:[%s273 + $0x10] sm:$0xff] %vm2009, %v1994
      %2011 = vst [vmem:[%s273 + $0x18] sm:$0xff] %v1917
      %2012 = vst [vmem:[%s273 + $0x20] sm:$0xff] %v1919
      %2013 = vst.msk [vmem:[%s273 + $0x28] sm:$0xff] %vm2009, %v1999
      %2014 = vst [vmem:[%s273 + $0x30] sm:$0x3] %v1923
      %2015 = vst [vmem:[%s273 + $0x38] sm:$0x3] %v1925
      %vm2016 = vcmask 549888
      %2017 = vst.msk [vmem:[%s273 + $0x40] sm:$0x3] %vm2016, %v2004
      %p2018 = scmp.lt.s32.totalorder %s22, 1
      %s2019 = scalar_select %p2018, %s22, 1
      %p2020 = scmp.lt.s32.totalorder %s21, 1
      %s2021 = scalar_select %p2020, %s21, 1
      %s2022 = smul.addr %s2021, 9
      %s2023 = smul.addr %s2019, 18
      %s2024 = sadd.s32 %s2022, %s2023
      %s2025 = smul.addr %s2024, 8
      %s2026 = scalar_lea.vmem %s6, %s2025
      // Predicated region
      $region49: #{rpn_head_forward.1} parent=43 // pred_check
        %p2027 = pneg %p180
      $region50: #{rpn_head_forward.1} parent=43 // pred_check_branch
        %2029 = sbr.rel (%p2027) target = $region52
      $region51: #{rpn_head_forward.1} parent=43 // pred_region
        _
      $region52: #{rpn_head_forward.1} parent=43 // pred_fallthru
        _
    $region44: #{rpn_head_forward.1} parent=5 // pred_fallthru
      _
    %p2030 = scmp.le.s32.totalorder 2, %s12
    // Predicated region
    $region53: #{rpn_head_forward.1} parent=5 // pred_check
      %p2031 = pneg %p2030
    $region54: #{rpn_head_forward.1} parent=5 // pred_check_branch
      %2033 = sbr.rel (%p2031) target = $region56
    $region55: #{rpn_head_forward.1} parent=5 // pred_region
      %s2034 = ssub.s32 %s12, 2
      // Predicated region
      $region57: #{rpn_head_forward.1} parent=55 // pred_check
        %p2035 = pneg %p186
      $region58: #{rpn_head_forward.1} parent=55 // pred_check_branch
        %2037 = sbr.rel (%p2035) target = $region60
      $region59: #{rpn_head_forward.1} parent=55 // pred_region
        %p2038 = scmp.lt.s32.totalorder %s24, 1
        %s2039 = scalar_select %p2038, %s24, 1
        %p2040 = scmp.lt.s32.totalorder %s23, 1
        %s2041 = scalar_select %p2040, %s23, 1
        %s2042 = smul.addr %s2041, 9
        %s2043 = smul.addr %s2039, 18
        %s2044 = sadd.s32 %s2042, %s2043
        %s2045 = smul.addr %s2044, 8
        %s2046 = scalar_lea.vmem %s6, %s2045
      $region60: #{rpn_head_forward.1} parent=55 // pred_fallthru
        _
    $region56: #{rpn_head_forward.1} parent=5 // pred_fallthru
      _
  $region6: #{rpn_head_forward.1} parent=0 // loop_footer
    %s16 = sadd.s32 1, %s12
  $region7: #{rpn_head_forward.1} parent=0 // loop_footer_branch
    %11 = sbr.rel target = $region3
  $region8: #{rpn_head_forward.1} parent=0 // loop_exit
    _

</llo_original>
